<compile_context>
chip_gen: v5e
topology: v5e:2x2
jax: 0.10.0
libtpu: 0.0.40
codegen_flags: <defaults>
</compile_context>

<pallas_src>
import functools
import math

import jax
import jax.numpy as jnp
from jax import lax
from jax.experimental import pallas as pl
from jax.experimental.pallas import tpu as pltpu

# approx reciprocal (EUP) is ~1e-3 rel-err vs exact softmax; flip for tight validation.
_EXACT_SOFTMAX = False


# ----------------------------------------------------------------------------
# Fused Pallas kernel
# ----------------------------------------------------------------------------
def _layer_norm(y, g, b, eps=1e-5):
    mu = jnp.mean(y, axis=-1, keepdims=True)
    var = jnp.mean((y - mu) ** 2, axis=-1, keepdims=True)
    return (y - mu) * lax.rsqrt(var + eps) * g + b


def dur_encoder_kernel(emb_ref, mask_ref, pe_ref,
                       wq_ref, bq_ref, wk_ref, bk_ref, wv_ref, bv_ref,
                       wo_ref, bo_ref, ln1g_ref, ln1b_ref,
                       w1_ref, b1_ref, w2_ref, b2_ref, ln2g_ref, ln2b_ref,
                       wh_ref, bh_ref,
                       out_ref,
                       x_ref,                       # persistent VMEM scratch (TB*S, D) f32
                       *, num_heads, scale, tb, seq):
    l = pl.program_id(1)
    n_layers = pl.num_programs(1)
    TB, S = tb, seq
    M = TB * S
    D = x_ref.shape[-1]
    H = num_heads
    dh = D // H
    inv_sqrt_dh = 1.0 / math.sqrt(dh)

    # ---- first layer step of this batch tile: x = emb * sqrt(D) + PE --------
    @pl.when(l == 0)
    def _():
        x0 = emb_ref[...] * scale + pe_ref[...][None, :, :]       # (TB, S, D) f32
        x_ref[...] = x0.reshape(M, D)

    x = x_ref[...]                                                # (M, D) f32
    xb = x.astype(jnp.bfloat16)

    # additive key-padding penalty, broadcast over heads: (TB*H, 1, S)
    # (matches the PyTorch reference: mask built from token==pad for ALL positions)
    neg = mask_ref[...] * 1e9                                     # (TB, 1, S)
    neg = jnp.broadcast_to(neg[:, None, :, :], (TB, H, 1, S)).reshape(TB * H, 1, S)

    # ---- multi-head self-attention (bf16 MXU inputs, f32 accumulation) ------
    q = jnp.dot(xb, wq_ref[0], preferred_element_type=jnp.float32) + bq_ref[0]
    k = jnp.dot(xb, wk_ref[0], preferred_element_type=jnp.float32) + bk_ref[0]
    v = jnp.dot(xb, wv_ref[0], preferred_element_type=jnp.float32) + bv_ref[0]

    def split_heads(t):                                           # (M, D) -> (TB*H, S, dh)
        t = t.reshape(TB, S, H, dh)
        t = pltpu.einshape('bshd->bhsd', t)
        return t.reshape(TB * H, S, dh)

    q3 = split_heads(q).astype(jnp.bfloat16)
    k3 = split_heads(k).astype(jnp.bfloat16)
    v3 = split_heads(v).astype(jnp.bfloat16)

    sc = jnp.einsum('nqd,nkd->nqk', q3, k3,
                    preferred_element_type=jnp.float32) * inv_sqrt_dh
    sc = sc - neg                                                 # mask padded keys
    sc = sc - jnp.max(sc, axis=-1, keepdims=True)
    p = jnp.exp(sc)
    denom = jnp.sum(p, axis=-1, keepdims=True)
    if _EXACT_SOFTMAX:
        p = p / denom
    else:
        p = p * pl.reciprocal(denom, approx=True)
    ctx3 = jnp.einsum('nqk,nkd->nqd', p.astype(jnp.bfloat16), v3,
                      preferred_element_type=jnp.float32)         # (TB*H, S, dh)

    ctx = pltpu.einshape('bhsd->bshd', ctx3.reshape(TB, H, S, dh)).reshape(M, D)
    attn = jnp.dot(ctx.astype(jnp.bfloat16), wo_ref[0],
                   preferred_element_type=jnp.float32) + bo_ref[0]

    # post-LN sublayer 1 (dropout = identity in eval mode)
    y = _layer_norm(x + attn, ln1g_ref[0], ln1b_ref[0])

    # ---- position-wise FFN ---------------------------------------------------
    h1 = jnp.maximum(
        jnp.dot(y.astype(jnp.bfloat16), w1_ref[0],
                preferred_element_type=jnp.float32) + b1_ref[0], 0.0)
    ff = jnp.dot(h1.astype(jnp.bfloat16), w2_ref[0],
                 preferred_element_type=jnp.float32) + b2_ref[0]

    # post-LN sublayer 2
    xn = _layer_norm(y + ff, ln2g_ref[0], ln2b_ref[0])
    x_ref[...] = xn

    # ---- fused lane-dense output heads on the last layer step ----------------
    @pl.when(l == n_layers - 1)
    def _():
        logits = jnp.dot(xn.astype(jnp.bfloat16), wh_ref[...],
                         preferred_element_type=jnp.float32) + bh_ref[...]
        out_ref[...] = logits.reshape(TB, S, -1)


# ----------------------------------------------------------------------------
# pallas_call wrapper
# ----------------------------------------------------------------------------
def _round_up(n, m):
    return ((n + m - 1) // m) * m


def _choose_batch_tile(B, S, target_rows=256):
    # fold batch so the matmul M-dimension is ~>=256, but keep the leading
    # "parallel" grid axis >= 2 when possible (v7x has 2 TensorCores).
    tb = max(1, min(B, max(1, target_rows // max(1, S))))
    while B % tb:
        tb -= 1
    if B // tb < 2 and B >= 2:
        tb = max(1, B // 2)
        while B % tb:
            tb -= 1
    return tb


def _vmem_limit_bytes():
    try:
        cap = int(pltpu.get_tpu_info().vmem_capacity_bytes)
    except Exception:
        cap = 128 * 1024 * 1024
    return max(32 * 1024 * 1024, min(96 * 1024 * 1024, cap - 8 * 1024 * 1024))


def sinusoidal_pe(seq_len, d_model):
    pos = jnp.arange(seq_len, dtype=jnp.float32)[:, None]
    div = jnp.exp(jnp.arange(0, d_model, 2, dtype=jnp.float32)
                  * (-math.log(10000.0) / d_model))
    pe = jnp.zeros((seq_len, d_model), jnp.float32)
    pe = pe.at[:, 0::2].set(jnp.sin(pos * div))
    pe = pe.at[:, 1::2].set(jnp.cos(pos * div))
    return pe


def dur_encoder_forward(token_ids, params, *, d_model, num_heads, pad_token_id=0):
    B, S = token_ids.shape
    D = d_model
    assert D % num_heads == 0, "d_model must be divisible by num_heads"

    # ---- embedding assembly (data-dependent gathers stay in plain JAX) ------
    rel_embed = jnp.take(params["rel"], token_ids[:, 0], axis=0)          # (B, D)
    onset_embed = jnp.take(params["onset"], token_ids[:, 1:], axis=0)     # (B, S-1, D)
    encoder_in = jnp.concatenate([rel_embed[:, None, :], onset_embed], axis=1)

    mask_f = (token_ids == pad_token_id).astype(jnp.float32)[:, None, :]  # (B, 1, S)
    pe = sinusoidal_pe(S, D)

    L = params["wq"].shape[0]
    F = params["w1"].shape[2]
    n_mea = params["wm"].shape[1]
    n_dur = params["wd"].shape[1]
    n_mea_p = _round_up(n_mea, 128)
    n_dur_p = _round_up(n_dur, 128)
    NH = n_mea_p + n_dur_p

    bf16 = jnp.bfloat16
    wq = params["wq"].astype(bf16)
    wk = params["wk"].astype(bf16)
    wv = params["wv"].astype(bf16)
    wo = params["wo"].astype(bf16)
    w1 = params["w1"].astype(bf16)
    w2 = params["w2"].astype(bf16)

    # fused lane-dense head weight [Wm | Wd], zero-padded to 128-lane columns
    wh = jnp.zeros((D, NH), jnp.float32)
    wh = wh.at[:, :n_mea].set(params["wm"])
    wh = wh.at[:, n_mea_p:n_mea_p + n_dur].set(params["wd"])
    bh = jnp.zeros((1, NH), jnp.float32)
    bh = bh.at[:, :n_mea].set(params["bm"])
    bh = bh.at[:, n_mea_p:n_mea_p + n_dur].set(params["bd"])
    wh = wh.astype(bf16)

    TB = _choose_batch_tile(B, S)
    assert B % TB == 0
    NB = B // TB

    kernel = functools.partial(dur_encoder_kernel, num_heads=num_heads,
                               scale=math.sqrt(D), tb=TB, seq=S)

    def inv(shape):                         # grid-invariant input
        n = len(shape)
        return pl.BlockSpec(shape, lambda b, l, _n=n: (0,) * _n)

    def per_layer(shape):                   # streamed along the l grid axis
        n = len(shape)
        return pl.BlockSpec((1,) + shape, lambda b, l, _n=n: (l,) + (0,) * _n)

    in_specs = [
        pl.BlockSpec((TB, S, D), lambda b, l: (b, 0, 0)),     # embeddings
        pl.BlockSpec((TB, 1, S), lambda b, l: (b, 0, 0)),     # key-padding mask
        inv((S, D)),                                          # positional encoding
        per_layer((D, D)), per_layer((1, D)),                 # Wq, bq
        per_layer((D, D)), per_layer((1, D)),                 # Wk, bk
        per_layer((D, D)), per_layer((1, D)),                 # Wv, bv
        per_layer((D, D)), per_layer((1, D)),                 # Wo, bo
        per_layer((1, D)), per_layer((1, D)),                 # ln1 gamma, beta
        per_layer((D, F)), per_layer((1, F)),                 # W1, b1
        per_layer((F, D)), per_layer((1, D)),                 # W2, b2
        per_layer((1, D)), per_layer((1, D)),                 # ln2 gamma, beta
        inv((D, NH)), inv((1, NH)),                           # fused heads (padded)
    ]
    out_specs = pl.BlockSpec((TB, S, NH), lambda b, l: (b, 0, 0))

    flops = int(B * (L * (8 * S * D * D + 4 * S * S * D + 4 * S * D * F)
                     + 2 * S * D * NH))
    transc = int(B * L * num_heads * S * S + B * L * 2 * S)
    w_bytes = int(2 * L * (4 * D * D + 2 * D * F))            # bf16 layer weights
    bytes_accessed = int(NB * w_bytes + encoder_in.size * 4 + B * S * NH * 4 + D * NH * 2)

    out = pl.pallas_call(
        kernel,
        out_shape=jax.ShapeDtypeStruct((B, S, NH), jnp.float32),
        grid=(NB, L),
        in_specs=in_specs,
        out_specs=out_specs,
        scratch_shapes=[pltpu.VMEM((TB * S, D), jnp.float32)],
        compiler_params=pltpu.CompilerParams(
            dimension_semantics=("parallel", "arbitrary"),
            vmem_limit_bytes=_vmem_limit_bytes()),
        cost_estimate=pl.CostEstimate(flops=flops, transcendentals=transc,
                                      bytes_accessed=bytes_accessed),
    )(encoder_in, mask_f, pe,
      wq, params["bq"], wk, params["bk"], wv, params["bv"], wo, params["bo"],
      params["ln1_g"], params["ln1_b"],
      w1, params["b1"], w2, params["b2"],
      params["ln2_g"], params["ln2_b"],
      wh, bh)

    m_logits = out[:, 0:1, :n_mea]                              # (B, 1, 65)
    d_logits = out[:, 1:, n_mea_p:n_mea_p + n_dur]              # (B, S-1, dur_size)
    return m_logits, d_logits


# ----------------------------------------------------------------------------
# Parameter construction
# ----------------------------------------------------------------------------
def make_params(key, *, vocab_size, d_model, d_ff, num_layers, dur_size):
    n_keys = 4 + 6 * num_layers
    kit = iter(jax.random.split(key, n_keys))

    def nrm(shape, scale=0.02):
        return (scale * jax.random.normal(next(kit), shape)).astype(jnp.float32)

    def zeros(shape):
        return jnp.zeros(shape, jnp.float32)

    onset = nrm((vocab_size, d_model))
    onset = onset.at[0].set(0.0)                      # padding_idx=0 row is zero
    rel = nrm((24, d_model))                          # EmbeddingBag(24, d_model)

    def stack(shape):
        return jnp.stack([nrm(shape) for _ in range(num_layers)], axis=0)

    wq = stack((d_model, d_model))
    wk = stack((d_model, d_model))
    wv = stack((d_model, d_model))
    wo = stack((d_model, d_model))
    w1 = stack((d_model, d_ff))
    w2 = stack((d_ff, d_model))

    wm = nrm((d_model, 65))
    wd = nrm((d_model, dur_size))

    L, D, F = num_layers, d_model, d_ff
    return dict(
        onset=onset, rel=rel,
        wq=wq, bq=zeros((L, 1, D)), wk=wk, bk=zeros((L, 1, D)),
        wv=wv, bv=zeros((L, 1, D)), wo=wo, bo=zeros((L, 1, D)),
        ln1_g=jnp.ones((L, 1, D), jnp.float32), ln1_b=zeros((L, 1, D)),
        w1=w1, b1=zeros((L, 1, F)), w2=w2, b2=zeros((L, 1, D)),
        ln2_g=jnp.ones((L, 1, D), jnp.float32), ln2_b=zeros((L, 1, D)),
        wm=wm, bm=zeros((1, 65)), wd=wd, bd=zeros((1, dur_size)),
    )


# ----------------------------------------------------------------------------
if __name__ == "__main__":
    # small, forward-consistent shapes
    B, S = 2, 8
    vocab_size = 101
    d_model = 32
    num_heads = 4
    d_ff = 64
    num_layers = 2
    dur_size = 16

    key = jax.random.PRNGKey(0)
    k_tok0, k_tok, k_param = jax.random.split(key, 3)

    # first token feeds the rel_embedding table (24 entries); rest are onset ids
    first_tok = jax.random.randint(k_tok0, (B, 1), 1, 24, dtype=jnp.int32)
    rest_tok = jax.random.randint(k_tok, (B, S - 1), 0, vocab_size, dtype=jnp.int32)
    rest_tok = rest_tok.at[:, -2:].set(0)   # some padding to exercise the mask
    token_ids = jnp.concatenate([first_tok, rest_tok], axis=1)

    params = make_params(k_param, vocab_size=vocab_size, d_model=d_model,
                         d_ff=d_ff, num_layers=num_layers, dur_size=dur_size)

    forward = jax.jit(functools.partial(dur_encoder_forward,
                                        d_model=d_model, num_heads=num_heads))
    m_logits, d_logits = forward(token_ids, params)
    m_logits = jax.block_until_ready(m_logits)
    d_logits = jax.block_until_ready(d_logits)

    assert m_logits.shape == (B, 1, 65), m_logits.shape
    assert d_logits.shape == (B, S - 1, dur_size), d_logits.shape
    assert bool(jnp.all(jnp.isfinite(m_logits))) and bool(jnp.all(jnp.isfinite(d_logits)))
    print("KERNEL_OK")
</pallas_src>

<mosaic_0001>
module attributes {stable_mosaic.version = 11 : i64} {
  func.func @dur_encoder_kernel(%arg0: i32, %arg1: i32, %arg2: memref<1x8x32xf32, #tpu.memory_space<vmem>>, %arg3: memref<1x1x8xf32, #tpu.memory_space<vmem>>, %arg4: memref<8x32xf32, #tpu.memory_space<vmem>>, %arg5: memref<1x32x32xbf16, #tpu.memory_space<vmem>>, %arg6: memref<1x1x32xf32, #tpu.memory_space<vmem>>, %arg7: memref<1x32x32xbf16, #tpu.memory_space<vmem>>, %arg8: memref<1x1x32xf32, #tpu.memory_space<vmem>>, %arg9: memref<1x32x32xbf16, #tpu.memory_space<vmem>>, %arg10: memref<1x1x32xf32, #tpu.memory_space<vmem>>, %arg11: memref<1x32x32xbf16, #tpu.memory_space<vmem>>, %arg12: memref<1x1x32xf32, #tpu.memory_space<vmem>>, %arg13: memref<1x1x32xf32, #tpu.memory_space<vmem>>, %arg14: memref<1x1x32xf32, #tpu.memory_space<vmem>>, %arg15: memref<1x32x64xbf16, #tpu.memory_space<vmem>>, %arg16: memref<1x1x64xf32, #tpu.memory_space<vmem>>, %arg17: memref<1x64x32xbf16, #tpu.memory_space<vmem>>, %arg18: memref<1x1x32xf32, #tpu.memory_space<vmem>>, %arg19: memref<1x1x32xf32, #tpu.memory_space<vmem>>, %arg20: memref<1x1x32xf32, #tpu.memory_space<vmem>>, %arg21: memref<32x256xbf16, #tpu.memory_space<vmem>>, %arg22: memref<1x256xf32, #tpu.memory_space<vmem>>, %arg23: memref<1x8x256xf32, #tpu.memory_space<vmem>>, %arg24: memref<8x32xf32, #tpu.memory_space<vmem>>) attributes {dimension_semantics = [#tpu.dimension_semantics<parallel>, #tpu.dimension_semantics<arbitrary>], iteration_bounds = array<i64: 2, 2>, scalar_prefetch = 0 : i64, scratch_operands = 1 : i64, tpu.core_type = #tpu.core_type<tc>, window_params = [{transform_indices = @transform_0, window_bounds = array<i64: 1, 8, 32>}, {transform_indices = @transform_1, window_bounds = array<i64: 1, 1, 8>}, {pipeline_mode = #tpu.pipeline_mode<synchronous>, transform_indices = @transform_2, window_bounds = array<i64: 8, 32>}, {transform_indices = @transform_3, window_bounds = array<i64: 1, 32, 32>}, {transform_indices = @transform_4, window_bounds = array<i64: 1, 1, 32>}, {transform_indices = @transform_5, window_bounds = array<i64: 1, 32, 32>}, {transform_indices = @transform_6, window_bounds = array<i64: 1, 1, 32>}, {transform_indices = @transform_7, window_bounds = array<i64: 1, 32, 32>}, {transform_indices = @transform_8, window_bounds = array<i64: 1, 1, 32>}, {transform_indices = @transform_9, window_bounds = array<i64: 1, 32, 32>}, {transform_indices = @transform_10, window_bounds = array<i64: 1, 1, 32>}, {transform_indices = @transform_11, window_bounds = array<i64: 1, 1, 32>}, {transform_indices = @transform_12, window_bounds = array<i64: 1, 1, 32>}, {transform_indices = @transform_13, window_bounds = array<i64: 1, 32, 64>}, {transform_indices = @transform_14, window_bounds = array<i64: 1, 1, 64>}, {transform_indices = @transform_15, window_bounds = array<i64: 1, 64, 32>}, {transform_indices = @transform_16, window_bounds = array<i64: 1, 1, 32>}, {transform_indices = @transform_17, window_bounds = array<i64: 1, 1, 32>}, {transform_indices = @transform_18, window_bounds = array<i64: 1, 1, 32>}, {pipeline_mode = #tpu.pipeline_mode<synchronous>, transform_indices = @transform_19, window_bounds = array<i64: 32, 256>}, {pipeline_mode = #tpu.pipeline_mode<synchronous>, transform_indices = @transform_20, window_bounds = array<i64: 1, 256>}, {transform_indices = @transform_21, window_bounds = array<i64: 1, 8, 256>}]} {
    %c0_i32 = arith.constant 0 : i32
    %0 = arith.cmpi eq, %arg1, %c0_i32 : i32
    %1 = arith.extui %0 : i1 to i32
    %c0_i32_0 = arith.constant 0 : i32
    %2 = arith.cmpi ne, %1, %c0_i32_0 : i32
    scf.if %2 {
      %c0_78 = arith.constant 0 : index
      %c0_79 = arith.constant 0 : index
      %c0_80 = arith.constant 0 : index
      %149 = vector.load %arg2[%c0_78, %c0_79, %c0_80] : memref<1x8x32xf32, #tpu.memory_space<vmem>>, vector<1x8x32xf32>
      %cst_81 = arith.constant 5.65685415 : f32
      %150 = vector.broadcast %cst_81 : f32 to vector<1x8x32xf32>
      %151 = arith.mulf %149, %150 : vector<1x8x32xf32>
      %c0_82 = arith.constant 0 : index
      %c0_83 = arith.constant 0 : index
      %152 = vector.load %arg4[%c0_82, %c0_83] : memref<8x32xf32, #tpu.memory_space<vmem>>, vector<8x32xf32>
      %153 = vector.shape_cast %152 : vector<8x32xf32> to vector<1x8x32xf32>
      %154 = arith.addf %151, %153 : vector<1x8x32xf32>
      %155 = vector.shape_cast %154 : vector<1x8x32xf32> to vector<8x32xf32>
      %c0_84 = arith.constant 0 : index
      %c0_85 = arith.constant 0 : index
      %156 = vector.load %arg24[%c0_84, %c0_85] : memref<8x32xf32, #tpu.memory_space<vmem>>, vector<8x32xf32>
      tpu.vector_store %arg24[%c0_84, %c0_85], %155 {strides = array<i32>} : memref<8x32xf32, #tpu.memory_space<vmem>>, vector<8x32xf32>,
    } else {
    }
    %c0 = arith.constant 0 : index
    %c0_1 = arith.constant 0 : index
    %3 = vector.load %arg24[%c0, %c0_1] : memref<8x32xf32, #tpu.memory_space<vmem>>, vector<8x32xf32>
    %4 = arith.truncf %3 : vector<8x32xf32> to vector<8x32xbf16>
    %c0_2 = arith.constant 0 : index
    %c0_3 = arith.constant 0 : index
    %c0_4 = arith.constant 0 : index
    %5 = vector.load %arg3[%c0_2, %c0_3, %c0_4] : memref<1x1x8xf32, #tpu.memory_space<vmem>>, vector<1x1x8xf32>
    %cst = arith.constant 1.000000e+09 : f32
    %6 = vector.broadcast %cst : f32 to vector<1x1x8xf32>
    %7 = arith.mulf %5, %6 : vector<1x1x8xf32>
    %8 = vector.shape_cast %7 : vector<1x1x8xf32> to vector<1x1x1x8xf32>
    %9 = vector.shape_cast %8 : vector<1x1x1x8xf32> to vector<1x1x1x8xf32>
    %10 = vector.broadcast %9 : vector<1x1x1x8xf32> to vector<1x4x1x8xf32>
    %11 = vector.shape_cast %10 : vector<1x4x1x8xf32> to vector<4x1x8xf32>
    %c0_5 = arith.constant 0 : index
    %c0_6 = arith.constant 0 : index
    %c0_7 = arith.constant 0 : index
    %12 = vector.load %arg5[%c0_5, %c0_6, %c0_7] : memref<1x32x32xbf16, #tpu.memory_space<vmem>>, vector<1x32x32xbf16>
    %13 = vector.shape_cast %12 : vector<1x32x32xbf16> to vector<32x32xbf16>
    %cst_8 = arith.constant dense<0.000000e+00> : vector<8x32xf32>
    %14 = tpu.matmul %4, %13, %cst_8 {dimension_numbers = #tpu.dot_dimension_numbers<[1], [0], [0], [1], [0, 0, 1, 1], [], []>} : vector<8x32xbf16>, vector<32x32xbf16>, vector<8x32xf32> -> vector<8x32xf32>
    %c0_9 = arith.constant 0 : index
    %c0_10 = arith.constant 0 : index
    %c0_11 = arith.constant 0 : index
    %15 = vector.load %arg6[%c0_9, %c0_10, %c0_11] : memref<1x1x32xf32, #tpu.memory_space<vmem>>, vector<1x1x32xf32>
    %16 = vector.shape_cast %15 : vector<1x1x32xf32> to vector<1x32xf32>
    %17 = vector.broadcast %16 : vector<1x32xf32> to vector<8x32xf32>
    %18 = arith.addf %14, %17 : vector<8x32xf32>
    %c0_12 = arith.constant 0 : index
    %c0_13 = arith.constant 0 : index
    %c0_14 = arith.constant 0 : index
    %19 = vector.load %arg7[%c0_12, %c0_13, %c0_14] : memref<1x32x32xbf16, #tpu.memory_space<vmem>>, vector<1x32x32xbf16>
    %20 = vector.shape_cast %19 : vector<1x32x32xbf16> to vector<32x32xbf16>
    %cst_15 = arith.constant dense<0.000000e+00> : vector<8x32xf32>
    %21 = tpu.matmul %4, %20, %cst_15 {dimension_numbers = #tpu.dot_dimension_numbers<[1], [0], [0], [1], [0, 0, 1, 1], [], []>} : vector<8x32xbf16>, vector<32x32xbf16>, vector<8x32xf32> -> vector<8x32xf32>
    %c0_16 = arith.constant 0 : index
    %c0_17 = arith.constant 0 : index
    %c0_18 = arith.constant 0 : index
    %22 = vector.load %arg8[%c0_16, %c0_17, %c0_18] : memref<1x1x32xf32, #tpu.memory_space<vmem>>, vector<1x1x32xf32>
    %23 = vector.shape_cast %22 : vector<1x1x32xf32> to vector<1x32xf32>
    %24 = vector.broadcast %23 : vector<1x32xf32> to vector<8x32xf32>
    %25 = arith.addf %21, %24 : vector<8x32xf32>
    %c0_19 = arith.constant 0 : index
    %c0_20 = arith.constant 0 : index
    %c0_21 = arith.constant 0 : index
    %26 = vector.load %arg9[%c0_19, %c0_20, %c0_21] : memref<1x32x32xbf16, #tpu.memory_space<vmem>>, vector<1x32x32xbf16>
    %27 = vector.shape_cast %26 : vector<1x32x32xbf16> to vector<32x32xbf16>
    %cst_22 = arith.constant dense<0.000000e+00> : vector<8x32xf32>
    %28 = tpu.matmul %4, %27, %cst_22 {dimension_numbers = #tpu.dot_dimension_numbers<[1], [0], [0], [1], [0, 0, 1, 1], [], []>} : vector<8x32xbf16>, vector<32x32xbf16>, vector<8x32xf32> -> vector<8x32xf32>
    %c0_23 = arith.constant 0 : index
    %c0_24 = arith.constant 0 : index
    %c0_25 = arith.constant 0 : index
    %29 = vector.load %arg10[%c0_23, %c0_24, %c0_25] : memref<1x1x32xf32, #tpu.memory_space<vmem>>, vector<1x1x32xf32>
    %30 = vector.shape_cast %29 : vector<1x1x32xf32> to vector<1x32xf32>
    %31 = vector.broadcast %30 : vector<1x32xf32> to vector<8x32xf32>
    %32 = arith.addf %28, %31 : vector<8x32xf32>
    %33 = vector.shape_cast %18 : vector<8x32xf32> to vector<1x8x4x8xf32>
    %34 = tpu.transpose %33, [0, 2, 1, 3] : vector<1x8x4x8xf32> -> vector<1x4x8x8xf32>
    %35 = vector.shape_cast %34 : vector<1x4x8x8xf32> to vector<4x8x8xf32>
    %36 = arith.truncf %35 : vector<4x8x8xf32> to vector<4x8x8xbf16>
    %37 = vector.shape_cast %25 : vector<8x32xf32> to vector<1x8x4x8xf32>
    %38 = tpu.transpose %37, [0, 2, 1, 3] : vector<1x8x4x8xf32> -> vector<1x4x8x8xf32>
    %39 = vector.shape_cast %38 : vector<1x4x8x8xf32> to vector<4x8x8xf32>
    %40 = arith.truncf %39 : vector<4x8x8xf32> to vector<4x8x8xbf16>
    %41 = vector.shape_cast %32 : vector<8x32xf32> to vector<1x8x4x8xf32>
    %42 = tpu.transpose %41, [0, 2, 1, 3] : vector<1x8x4x8xf32> -> vector<1x4x8x8xf32>
    %43 = vector.shape_cast %42 : vector<1x4x8x8xf32> to vector<4x8x8xf32>
    %44 = arith.truncf %43 : vector<4x8x8xf32> to vector<4x8x8xbf16>
    "tpu.trace_start"() <{level = 10 : i32, message = "nqd,nkd->nqk"}> : () -> ()
    %cst_26 = arith.constant dense<0.000000e+00> : vector<4x8x8xf32>
    %45 = tpu.matmul %36, %40, %cst_26 {dimension_numbers = #tpu.dot_dimension_numbers<[2], [2], [1], [1], [0, 0, 0, 1, 1, 1], [0], [0]>} : vector<4x8x8xbf16>, vector<4x8x8xbf16>, vector<4x8x8xf32> -> vector<4x8x8xf32>
    "tpu.trace_stop"() : () -> ()
    %cst_27 = arith.constant 0.353553385 : f32
    %46 = vector.broadcast %cst_27 : f32 to vector<4x8x8xf32>
    %47 = arith.mulf %45, %46 : vector<4x8x8xf32>
    %48 = vector.broadcast %11 : vector<4x1x8xf32> to vector<4x8x8xf32>
    %49 = arith.subf %47, %48 : vector<4x8x8xf32>
    %cst_28 = arith.constant dense<0xFF800000> : vector<4x8xf32>
    %50 = vector.multi_reduction <maximumf>, %49, %cst_28 [2] : vector<4x8x8xf32> to vector<4x8xf32>
    %51 = vector.shape_cast %50 : vector<4x8xf32> to vector<4x8x1xf32>
    %52 = vector.broadcast %51 : vector<4x8x1xf32> to vector<4x8x8xf32>
    %53 = arith.subf %49, %52 : vector<4x8x8xf32>
    %54 = math.exp %53 : vector<4x8x8xf32>
    %cst_29 = arith.constant dense<0.000000e+00> : vector<4x8xf32>
    %55 = vector.multi_reduction <add>, %54, %cst_29 [2] : vector<4x8x8xf32> to vector<4x8xf32>
    %56 = vector.shape_cast %55 : vector<4x8xf32> to vector<4x8x1xf32>
    %57 = tpu.reciprocal %56 {approx = true} : vector<4x8x1xf32> -> vector<4x8x1xf32>
    %58 = vector.broadcast %57 : vector<4x8x1xf32> to vector<4x8x8xf32>
    %59 = arith.mulf %54, %58 : vector<4x8x8xf32>
    %60 = arith.truncf %59 : vector<4x8x8xf32> to vector<4x8x8xbf16>
    "tpu.trace_start"() <{level = 10 : i32, message = "nqk,nkd->nqd"}> : () -> ()
    %cst_30 = arith.constant dense<0.000000e+00> : vector<4x8x8xf32>
    %61 = tpu.matmul %60, %44, %cst_30 {dimension_numbers = #tpu.dot_dimension_numbers<[2], [1], [1], [2], [0, 0, 0, 1, 1, 2], [0], [0]>} : vector<4x8x8xbf16>, vector<4x8x8xbf16>, vector<4x8x8xf32> -> vector<4x8x8xf32>
    "tpu.trace_stop"() : () -> ()
    %62 = vector.shape_cast %61 : vector<4x8x8xf32> to vector<1x4x8x8xf32>
    %63 = tpu.transpose %62, [0, 2, 1, 3] : vector<1x4x8x8xf32> -> vector<1x8x4x8xf32>
    %64 = vector.shape_cast %63 : vector<1x8x4x8xf32> to vector<8x32xf32>
    %65 = arith.truncf %64 : vector<8x32xf32> to vector<8x32xbf16>
    %c0_31 = arith.constant 0 : index
    %c0_32 = arith.constant 0 : index
    %c0_33 = arith.constant 0 : index
    %66 = vector.load %arg11[%c0_31, %c0_32, %c0_33] : memref<1x32x32xbf16, #tpu.memory_space<vmem>>, vector<1x32x32xbf16>
    %67 = vector.shape_cast %66 : vector<1x32x32xbf16> to vector<32x32xbf16>
    %cst_34 = arith.constant dense<0.000000e+00> : vector<8x32xf32>
    %68 = tpu.matmul %65, %67, %cst_34 {dimension_numbers = #tpu.dot_dimension_numbers<[1], [0], [0], [1], [0, 0, 1, 1], [], []>} : vector<8x32xbf16>, vector<32x32xbf16>, vector<8x32xf32> -> vector<8x32xf32>
    %c0_35 = arith.constant 0 : index
    %c0_36 = arith.constant 0 : index
    %c0_37 = arith.constant 0 : index
    %69 = vector.load %arg12[%c0_35, %c0_36, %c0_37] : memref<1x1x32xf32, #tpu.memory_space<vmem>>, vector<1x1x32xf32>
    %70 = vector.shape_cast %69 : vector<1x1x32xf32> to vector<1x32xf32>
    %71 = vector.broadcast %70 : vector<1x32xf32> to vector<8x32xf32>
    %72 = arith.addf %68, %71 : vector<8x32xf32>
    %73 = arith.addf %3, %72 : vector<8x32xf32>
    %c0_38 = arith.constant 0 : index
    %c0_39 = arith.constant 0 : index
    %c0_40 = arith.constant 0 : index
    %74 = vector.load %arg13[%c0_38, %c0_39, %c0_40] : memref<1x1x32xf32, #tpu.memory_space<vmem>>, vector<1x1x32xf32>
    %75 = vector.shape_cast %74 : vector<1x1x32xf32> to vector<1x32xf32>
    %c0_41 = arith.constant 0 : index
    %c0_42 = arith.constant 0 : index
    %c0_43 = arith.constant 0 : index
    %76 = vector.load %arg14[%c0_41, %c0_42, %c0_43] : memref<1x1x32xf32, #tpu.memory_space<vmem>>, vector<1x1x32xf32>
    %77 = vector.shape_cast %76 : vector<1x1x32xf32> to vector<1x32xf32>
    %cst_44 = arith.constant dense<0.000000e+00> : vector<8xf32>
    %78 = vector.multi_reduction <add>, %73, %cst_44 [1] : vector<8x32xf32> to vector<8xf32>
    %79 = vector.shape_cast %78 : vector<8xf32> to vector<8x1xf32>
    %cst_45 = arith.constant 3.200000e+01 : f32
    %80 = vector.broadcast %cst_45 : f32 to vector<8x1xf32>
    %81 = arith.divf %79, %80 : vector<8x1xf32>
    %82 = vector.broadcast %81 : vector<8x1xf32> to vector<8x32xf32>
    %83 = arith.subf %73, %82 : vector<8x32xf32>
    %84 = arith.mulf %83, %83 : vector<8x32xf32>
    %cst_46 = arith.constant dense<0.000000e+00> : vector<8xf32>
    %85 = vector.multi_reduction <add>, %84, %cst_46 [1] : vector<8x32xf32> to vector<8xf32>
    %86 = vector.shape_cast %85 : vector<8xf32> to vector<8x1xf32>
    %cst_47 = arith.constant 3.200000e+01 : f32
    %87 = vector.broadcast %cst_47 : f32 to vector<8x1xf32>
    %88 = arith.divf %86, %87 : vector<8x1xf32>
    %89 = vector.broadcast %81 : vector<8x1xf32> to vector<8x32xf32>
    %90 = arith.subf %73, %89 : vector<8x32xf32>
    %cst_48 = arith.constant 9.99999974E-6 : f32
    %91 = vector.broadcast %cst_48 : f32 to vector<8x1xf32>
    %92 = arith.addf %88, %91 : vector<8x1xf32>
    %93 = math.rsqrt %92 : vector<8x1xf32>
    %94 = vector.broadcast %93 : vector<8x1xf32> to vector<8x32xf32>
    %95 = arith.mulf %90, %94 : vector<8x32xf32>
    %96 = vector.broadcast %75 : vector<1x32xf32> to vector<8x32xf32>
    %97 = arith.mulf %95, %96 : vector<8x32xf32>
    %98 = vector.broadcast %77 : vector<1x32xf32> to vector<8x32xf32>
    %99 = arith.addf %97, %98 : vector<8x32xf32>
    %100 = arith.truncf %99 : vector<8x32xf32> to vector<8x32xbf16>
    %c0_49 = arith.constant 0 : index
    %c0_50 = arith.constant 0 : index
    %c0_51 = arith.constant 0 : index
    %101 = vector.load %arg15[%c0_49, %c0_50, %c0_51] : memref<1x32x64xbf16, #tpu.memory_space<vmem>>, vector<1x32x64xbf16>
    %102 = vector.shape_cast %101 : vector<1x32x64xbf16> to vector<32x64xbf16>
    %cst_52 = arith.constant dense<0.000000e+00> : vector<8x64xf32>
    %103 = tpu.matmul %100, %102, %cst_52 {dimension_numbers = #tpu.dot_dimension_numbers<[1], [0], [0], [1], [0, 0, 1, 1], [], []>} : vector<8x32xbf16>, vector<32x64xbf16>, vector<8x64xf32> -> vector<8x64xf32>
    %c0_53 = arith.constant 0 : index
    %c0_54 = arith.constant 0 : index
    %c0_55 = arith.constant 0 : index
    %104 = vector.load %arg16[%c0_53, %c0_54, %c0_55] : memref<1x1x64xf32, #tpu.memory_space<vmem>>, vector<1x1x64xf32>
    %105 = vector.shape_cast %104 : vector<1x1x64xf32> to vector<1x64xf32>
    %106 = vector.broadcast %105 : vector<1x64xf32> to vector<8x64xf32>
    %107 = arith.addf %103, %106 : vector<8x64xf32>
    %cst_56 = arith.constant 0.000000e+00 : f32
    %108 = vector.broadcast %cst_56 : f32 to vector<8x64xf32>
    %109 = arith.maximumf %107, %108 : vector<8x64xf32>
    %110 = arith.truncf %109 : vector<8x64xf32> to vector<8x64xbf16>
    %c0_57 = arith.constant 0 : index
    %c0_58 = arith.constant 0 : index
    %c0_59 = arith.constant 0 : index
    %111 = vector.load %arg17[%c0_57, %c0_58, %c0_59] : memref<1x64x32xbf16, #tpu.memory_space<vmem>>, vector<1x64x32xbf16>
    %112 = vector.shape_cast %111 : vector<1x64x32xbf16> to vector<64x32xbf16>
    %cst_60 = arith.constant dense<0.000000e+00> : vector<8x32xf32>
    %113 = tpu.matmul %110, %112, %cst_60 {dimension_numbers = #tpu.dot_dimension_numbers<[1], [0], [0], [1], [0, 0, 1, 1], [], []>} : vector<8x64xbf16>, vector<64x32xbf16>, vector<8x32xf32> -> vector<8x32xf32>
    %c0_61 = arith.constant 0 : index
    %c0_62 = arith.constant 0 : index
    %c0_63 = arith.constant 0 : index
    %114 = vector.load %arg18[%c0_61, %c0_62, %c0_63] : memref<1x1x32xf32, #tpu.memory_space<vmem>>, vector<1x1x32xf32>
    %115 = vector.shape_cast %114 : vector<1x1x32xf32> to vector<1x32xf32>
    %116 = vector.broadcast %115 : vector<1x32xf32> to vector<8x32xf32>
    %117 = arith.addf %113, %116 : vector<8x32xf32>
    %118 = arith.addf %99, %117 : vector<8x32xf32>
    %c0_64 = arith.constant 0 : index
    %c0_65 = arith.constant 0 : index
    %c0_66 = arith.constant 0 : index
    %119 = vector.load %arg19[%c0_64, %c0_65, %c0_66] : memref<1x1x32xf32, #tpu.memory_space<vmem>>, vector<1x1x32xf32>
    %120 = vector.shape_cast %119 : vector<1x1x32xf32> to vector<1x32xf32>
    %c0_67 = arith.constant 0 : index
    %c0_68 = arith.constant 0 : index
    %c0_69 = arith.constant 0 : index
    %121 = vector.load %arg20[%c0_67, %c0_68, %c0_69] : memref<1x1x32xf32, #tpu.memory_space<vmem>>, vector<1x1x32xf32>
    %122 = vector.shape_cast %121 : vector<1x1x32xf32> to vector<1x32xf32>
    %cst_70 = arith.constant dense<0.000000e+00> : vector<8xf32>
    %123 = vector.multi_reduction <add>, %118, %cst_70 [1] : vector<8x32xf32> to vector<8xf32>
    %124 = vector.shape_cast %123 : vector<8xf32> to vector<8x1xf32>
    %cst_71 = arith.constant 3.200000e+01 : f32
    %125 = vector.broadcast %cst_71 : f32 to vector<8x1xf32>
    %126 = arith.divf %124, %125 : vector<8x1xf32>
    %127 = vector.broadcast %126 : vector<8x1xf32> to vector<8x32xf32>
    %128 = arith.subf %118, %127 : vector<8x32xf32>
    %129 = arith.mulf %128, %128 : vector<8x32xf32>
    %cst_72 = arith.constant dense<0.000000e+00> : vector<8xf32>
    %130 = vector.multi_reduction <add>, %129, %cst_72 [1] : vector<8x32xf32> to vector<8xf32>
    %131 = vector.shape_cast %130 : vector<8xf32> to vector<8x1xf32>
    %cst_73 = arith.constant 3.200000e+01 : f32
    %132 = vector.broadcast %cst_73 : f32 to vector<8x1xf32>
    %133 = arith.divf %131, %132 : vector<8x1xf32>
    %134 = vector.broadcast %126 : vector<8x1xf32> to vector<8x32xf32>
    %135 = arith.subf %118, %134 : vector<8x32xf32>
    %cst_74 = arith.constant 9.99999974E-6 : f32
    %136 = vector.broadcast %cst_74 : f32 to vector<8x1xf32>
    %137 = arith.addf %133, %136 : vector<8x1xf32>
    %138 = math.rsqrt %137 : vector<8x1xf32>
    %139 = vector.broadcast %138 : vector<8x1xf32> to vector<8x32xf32>
    %140 = arith.mulf %135, %139 : vector<8x32xf32>
    %141 = vector.broadcast %120 : vector<1x32xf32> to vector<8x32xf32>
    %142 = arith.mulf %140, %141 : vector<8x32xf32>
    %143 = vector.broadcast %122 : vector<1x32xf32> to vector<8x32xf32>
    %144 = arith.addf %142, %143 : vector<8x32xf32>
    %c0_75 = arith.constant 0 : index
    %c0_76 = arith.constant 0 : index
    %145 = vector.load %arg24[%c0_75, %c0_76] : memref<8x32xf32, #tpu.memory_space<vmem>>, vector<8x32xf32>
    tpu.vector_store %arg24[%c0_75, %c0_76], %144 {strides = array<i32>} : memref<8x32xf32, #tpu.memory_space<vmem>>, vector<8x32xf32>,
    %c1_i32 = arith.constant 1 : i32
    %146 = arith.cmpi eq, %arg1, %c1_i32 : i32
    %147 = arith.extui %146 : i1 to i32
    %c0_i32_77 = arith.constant 0 : i32
    %148 = arith.cmpi ne, %147, %c0_i32_77 : i32
    scf.if %148 {
      %149 = arith.truncf %144 : vector<8x32xf32> to vector<8x32xbf16>
      %c0_78 = arith.constant 0 : index
      %c0_79 = arith.constant 0 : index
      %150 = vector.load %arg21[%c0_78, %c0_79] : memref<32x256xbf16, #tpu.memory_space<vmem>>, vector<32x256xbf16>
      %cst_80 = arith.constant dense<0.000000e+00> : vector<8x256xf32>
      %151 = tpu.matmul %149, %150, %cst_80 {dimension_numbers = #tpu.dot_dimension_numbers<[1], [0], [0], [1], [0, 0, 1, 1], [], []>} : vector<8x32xbf16>, vector<32x256xbf16>, vector<8x256xf32> -> vector<8x256xf32>
      %c0_81 = arith.constant 0 : index
      %c0_82 = arith.constant 0 : index
      %152 = vector.load %arg22[%c0_81, %c0_82] : memref<1x256xf32, #tpu.memory_space<vmem>>, vector<1x256xf32>
      %153 = vector.broadcast %152 : vector<1x256xf32> to vector<8x256xf32>
      %154 = arith.addf %151, %153 : vector<8x256xf32>
      %155 = vector.shape_cast %154 : vector<8x256xf32> to vector<1x8x256xf32>
      %c0_83 = arith.constant 0 : index
      %c0_84 = arith.constant 0 : index
      %c0_85 = arith.constant 0 : index
      %156 = vector.load %arg23[%c0_83, %c0_84, %c0_85] : memref<1x8x256xf32, #tpu.memory_space<vmem>>, vector<1x8x256xf32>
      tpu.vector_store %arg23[%c0_83, %c0_84, %c0_85], %155 {strides = array<i32>} : memref<1x8x256xf32, #tpu.memory_space<vmem>>, vector<1x8x256xf32>,
    } else {
    }
    return
  }
  func.func @transform_0(%arg0: i32, %arg1: i32) -> (i32, i32, i32) {
    %c0_i32 = arith.constant 0 : i32
    %c0_i32_0 = arith.constant 0 : i32
    %c0_i32_1 = arith.constant 0 : i32
    return %arg0, %c0_i32, %c0_i32_0 : i32, i32, i32
  }
  func.func @transform_1(%arg0: i32, %arg1: i32) -> (i32, i32, i32) {
    %c0_i32 = arith.constant 0 : i32
    %c0_i32_0 = arith.constant 0 : i32
    %c0_i32_1 = arith.constant 0 : i32
    return %arg0, %c0_i32, %c0_i32_0 : i32, i32, i32
  }
  func.func @transform_2(%arg0: i32, %arg1: i32) -> (i32, i32) {
    %c0_i32 = arith.constant 0 : i32
    %c0_i32_0 = arith.constant 0 : i32
    %c0_i32_1 = arith.constant 0 : i32
    return %c0_i32, %c0_i32_0 : i32, i32
  }
  func.func @transform_3(%arg0: i32, %arg1: i32) -> (i32, i32, i32) {
    %c0_i32 = arith.constant 0 : i32
    %c0_i32_0 = arith.constant 0 : i32
    %c0_i32_1 = arith.constant 0 : i32
    return %arg1, %c0_i32, %c0_i32_0 : i32, i32, i32
  }
  func.func @transform_4(%arg0: i32, %arg1: i32) -> (i32, i32, i32) {
    %c0_i32 = arith.constant 0 : i32
    %c0_i32_0 = arith.constant 0 : i32
    %c0_i32_1 = arith.constant 0 : i32
    return %arg1, %c0_i32, %c0_i32_0 : i32, i32, i32
  }
  func.func @transform_5(%arg0: i32, %arg1: i32) -> (i32, i32, i32) {
    %c0_i32 = arith.constant 0 : i32
    %c0_i32_0 = arith.constant 0 : i32
    %c0_i32_1 = arith.constant 0 : i32
    return %arg1, %c0_i32, %c0_i32_0 : i32, i32, i32
  }
  func.func @transform_6(%arg0: i32, %arg1: i32) -> (i32, i32, i32) {
    %c0_i32 = arith.constant 0 : i32
    %c0_i32_0 = arith.constant 0 : i32
    %c0_i32_1 = arith.constant 0 : i32
    return %arg1, %c0_i32, %c0_i32_0 : i32, i32, i32
  }
  func.func @transform_7(%arg0: i32, %arg1: i32) -> (i32, i32, i32) {
    %c0_i32 = arith.constant 0 : i32
    %c0_i32_0 = arith.constant 0 : i32
    %c0_i32_1 = arith.constant 0 : i32
    return %arg1, %c0_i32, %c0_i32_0 : i32, i32, i32
  }
  func.func @transform_8(%arg0: i32, %arg1: i32) -> (i32, i32, i32) {
    %c0_i32 = arith.constant 0 : i32
    %c0_i32_0 = arith.constant 0 : i32
    %c0_i32_1 = arith.constant 0 : i32
    return %arg1, %c0_i32, %c0_i32_0 : i32, i32, i32
  }
  func.func @transform_9(%arg0: i32, %arg1: i32) -> (i32, i32, i32) {
    %c0_i32 = arith.constant 0 : i32
    %c0_i32_0 = arith.constant 0 : i32
    %c0_i32_1 = arith.constant 0 : i32
    return %arg1, %c0_i32, %c0_i32_0 : i32, i32, i32
  }
  func.func @transform_10(%arg0: i32, %arg1: i32) -> (i32, i32, i32) {
    %c0_i32 = arith.constant 0 : i32
    %c0_i32_0 = arith.constant 0 : i32
    %c0_i32_1 = arith.constant 0 : i32
    return %arg1, %c0_i32, %c0_i32_0 : i32, i32, i32
  }
  func.func @transform_11(%arg0: i32, %arg1: i32) -> (i32, i32, i32) {
    %c0_i32 = arith.constant 0 : i32
    %c0_i32_0 = arith.constant 0 : i32
    %c0_i32_1 = arith.constant 0 : i32
    return %arg1, %c0_i32, %c0_i32_0 : i32, i32, i32
  }
  func.func @transform_12(%arg0: i32, %arg1: i32) -> (i32, i32, i32) {
    %c0_i32 = arith.constant 0 : i32
    %c0_i32_0 = arith.constant 0 : i32
    %c0_i32_1 = arith.constant 0 : i32
    return %arg1, %c0_i32, %c0_i32_0 : i32, i32, i32
  }
  func.func @transform_13(%arg0: i32, %arg1: i32) -> (i32, i32, i32) {
    %c0_i32 = arith.constant 0 : i32
    %c0_i32_0 = arith.constant 0 : i32
    %c0_i32_1 = arith.constant 0 : i32
    return %arg1, %c0_i32, %c0_i32_0 : i32, i32, i32
  }
  func.func @transform_14(%arg0: i32, %arg1: i32) -> (i32, i32, i32) {
    %c0_i32 = arith.constant 0 : i32
    %c0_i32_0 = arith.constant 0 : i32
    %c0_i32_1 = arith.constant 0 : i32
    return %arg1, %c0_i32, %c0_i32_0 : i32, i32, i32
  }
  func.func @transform_15(%arg0: i32, %arg1: i32) -> (i32, i32, i32) {
    %c0_i32 = arith.constant 0 : i32
    %c0_i32_0 = arith.constant 0 : i32
    %c0_i32_1 = arith.constant 0 : i32
    return %arg1, %c0_i32, %c0_i32_0 : i32, i32, i32
  }
  func.func @transform_16(%arg0: i32, %arg1: i32) -> (i32, i32, i32) {
    %c0_i32 = arith.constant 0 : i32
    %c0_i32_0 = arith.constant 0 : i32
    %c0_i32_1 = arith.constant 0 : i32
    return %arg1, %c0_i32, %c0_i32_0 : i32, i32, i32
  }
  func.func @transform_17(%arg0: i32, %arg1: i32) -> (i32, i32, i32) {
    %c0_i32 = arith.constant 0 : i32
    %c0_i32_0 = arith.constant 0 : i32
    %c0_i32_1 = arith.constant 0 : i32
    return %arg1, %c0_i32, %c0_i32_0 : i32, i32, i32
  }
  func.func @transform_18(%arg0: i32, %arg1: i32) -> (i32, i32, i32) {
    %c0_i32 = arith.constant 0 : i32
    %c0_i32_0 = arith.constant 0 : i32
    %c0_i32_1 = arith.constant 0 : i32
    return %arg1, %c0_i32, %c0_i32_0 : i32, i32, i32
  }
  func.func @transform_19(%arg0: i32, %arg1: i32) -> (i32, i32) {
    %c0_i32 = arith.constant 0 : i32
    %c0_i32_0 = arith.constant 0 : i32
    %c0_i32_1 = arith.constant 0 : i32
    return %c0_i32, %c0_i32_0 : i32, i32
  }
  func.func @transform_20(%arg0: i32, %arg1: i32) -> (i32, i32) {
    %c0_i32 = arith.constant 0 : i32
    %c0_i32_0 = arith.constant 0 : i32
    %c0_i32_1 = arith.constant 0 : i32
    return %c0_i32, %c0_i32_0 : i32, i32
  }
  func.func @transform_21(%arg0: i32, %arg1: i32) -> (i32, i32, i32) {
    %c0_i32 = arith.constant 0 : i32
    %c0_i32_0 = arith.constant 0 : i32
    %c0_i32_1 = arith.constant 0 : i32
    return %arg0, %c0_i32, %c0_i32_0 : i32, i32, i32
  }
}

</mosaic_0001>

<llo_original>
// kernel: dur_encoder_forward.1
$region0: #{dur_encoder_forward.1}
  #allocation0 [shape = 'u32[]', space=smem, size = 0x4, offset = 0x4, fixed_abs, tag = 'smem constant byte address 0x4 - core index']
  #allocation1 [shape = 'u32[72,128]{1,0:T(1,128)}', space=vmem, size = 0x9000, scoped, tag = 'internal scratch']
  #allocation2 [shape = 'f32[8,32]{1,0:T(8,128)}', space=vmem, size = 0x1000, scoped, tag = 'scratch operand']
  %s0 = inlined_call_operand.vmem [shape: f32[2,8,32], index: 0, kind: input, shape index: {}]
  %s1 = inlined_call_operand.vmem [shape: f32[2,1,8], index: 1, kind: input, shape index: {}]
  %s2 = inlined_call_operand.vmem [shape: f32[8,32], index: 2, kind: input, shape index: {}]
  %s3 = inlined_call_operand.vmem [shape: bf16[2,32,32], index: 3, kind: input, shape index: {}]
  %s4 = inlined_call_operand.vmem [shape: f32[2,1,32], index: 4, kind: input, shape index: {}]
  %s5 = inlined_call_operand.vmem [shape: bf16[2,32,32], index: 5, kind: input, shape index: {}]
  %s6 = inlined_call_operand.vmem [shape: f32[2,1,32], index: 6, kind: input, shape index: {}]
  %s7 = inlined_call_operand.vmem [shape: bf16[2,32,32], index: 7, kind: input, shape index: {}]
  %s8 = inlined_call_operand.vmem [shape: f32[2,1,32], index: 8, kind: input, shape index: {}]
  %s9 = inlined_call_operand.vmem [shape: bf16[2,32,32], index: 9, kind: input, shape index: {}]
  %s10 = inlined_call_operand.vmem [shape: f32[2,1,32], index: 10, kind: input, shape index: {}]
  %s11 = inlined_call_operand.vmem [shape: f32[2,1,32], index: 11, kind: input, shape index: {}]
  %s12 = inlined_call_operand.vmem [shape: f32[2,1,32], index: 12, kind: input, shape index: {}]
  %s13 = inlined_call_operand.vmem [shape: bf16[2,32,64], index: 13, kind: input, shape index: {}]
  %s14 = inlined_call_operand.vmem [shape: f32[2,1,64], index: 14, kind: input, shape index: {}]
  %s15 = inlined_call_operand.vmem [shape: bf16[2,64,32], index: 15, kind: input, shape index: {}]
  %s16 = inlined_call_operand.vmem [shape: f32[2,1,32], index: 16, kind: input, shape index: {}]
  %s17 = inlined_call_operand.vmem [shape: f32[2,1,32], index: 17, kind: input, shape index: {}]
  %s18 = inlined_call_operand.vmem [shape: f32[2,1,32], index: 18, kind: input, shape index: {}]
  %s19 = inlined_call_operand.vmem [shape: bf16[32,256], index: 19, kind: input, shape index: {}]
  %s20 = inlined_call_operand.vmem [shape: f32[1,256], index: 20, kind: input, shape index: {}]
  %s21 = inlined_call_operand.vmem [shape: f32[2,8,256], index: 21, kind: output, shape index: {}]
  %s22 = sld [smem:[#allocation0]]
  $region125: #{dur_encoder_forward.1} parent=0
    _
  %s24 = ssub.s32 1, %s22
  %s25 = scalar_select 0, %s24, %s22
  loop: start=0, step=1, limit=6
  $region2: #{dur_encoder_forward.1} parent=0 // loop_pre_header
    _
  $region3: #{dur_encoder_forward.1} parent=0 // loop_header
    %s27 = sphi 0, %s31
    %p28 = scmp.ge.s32.totalorder %s27, 6
    %s34 = sphi 0, %s46
    %s35 = sphi 0, %s42
    %s36 = sphi 0, %s34
    %s37 = sphi 0, %s35
    %s38 = sphi 0, %s36
    %s39 = sphi 0, %s37
    %s49 = sphi 0, %s51
    %s52 = sphi 0, %s49
    %s53 = sphi 0, %s52
    %s69 = sphi 0, %s53
    %s75 = sphi 0, %s77
    %s78 = sphi 0, %s75
    %s79 = sphi 0, %s78
    %s95 = sphi 0, %s79
    %s99 = sphi 0, %s99
    %s101 = sphi 0, %s99
    %s102 = sphi 0, %s101
    %s116 = sphi 0, %s102
    %s122 = sphi 0, %s124
    %s125 = sphi 0, %s122
    %s126 = sphi 0, %s125
    %s142 = sphi 0, %s126
    %s148 = sphi 0, %s150
    %s151 = sphi 0, %s148
    %s152 = sphi 0, %s151
    %s168 = sphi 0, %s152
    %s174 = sphi 0, %s176
    %s177 = sphi 0, %s174
    %s178 = sphi 0, %s177
    %s194 = sphi 0, %s178
    %s200 = sphi 0, %s202
    %s203 = sphi 0, %s200
    %s204 = sphi 0, %s203
    %s220 = sphi 0, %s204
    %s226 = sphi 0, %s228
    %s229 = sphi 0, %s226
    %s230 = sphi 0, %s229
    %s246 = sphi 0, %s230
    %s252 = sphi 0, %s254
    %s255 = sphi 0, %s252
    %s256 = sphi 0, %s255
    %s272 = sphi 0, %s256
    %s278 = sphi 0, %s280
    %s281 = sphi 0, %s278
    %s282 = sphi 0, %s281
    %s298 = sphi 0, %s282
    %s304 = sphi 0, %s306
    %s307 = sphi 0, %s304
    %s308 = sphi 0, %s307
    %s324 = sphi 0, %s308
    %s330 = sphi 0, %s332
    %s333 = sphi 0, %s330
    %s334 = sphi 0, %s333
    %s350 = sphi 0, %s334
    %s356 = sphi 0, %s358
    %s359 = sphi 0, %s356
    %s360 = sphi 0, %s359
    %s376 = sphi 0, %s360
    %s382 = sphi 0, %s384
    %s385 = sphi 0, %s382
    %s386 = sphi 0, %s385
    %s402 = sphi 0, %s386
    %s408 = sphi 0, %s410
    %s411 = sphi 0, %s408
    %s412 = sphi 0, %s411
    %s428 = sphi 0, %s412
    %s434 = sphi 0, %s436
    %s437 = sphi 0, %s434
    %s438 = sphi 0, %s437
    %s454 = sphi 0, %s438
    %s460 = sphi 0, %s462
    %s463 = sphi 0, %s460
    %s464 = sphi 0, %s463
    %s480 = sphi 0, %s464
    %s486 = sphi 0, %s488
    %s489 = sphi 0, %s486
    %s490 = sphi 0, %s489
    %s506 = sphi 0, %s490
    %s512 = sphi 0, %s514
    %s515 = sphi 0, %s512
    %s516 = sphi 0, %s515
    %s532 = sphi 0, %s516
    %s536 = sphi 0, %s536
    %s538 = sphi 0, %s536
    %s539 = sphi 0, %s538
    %s553 = sphi 0, %s539
    %s557 = sphi 0, %s557
    %s559 = sphi 0, %s557
    %s560 = sphi 0, %s559
    %s574 = sphi 0, %s560
    %s580 = sphi 0, %s582
    %s583 = sphi 0, %s580
    %s584 = sphi 0, %s583
    %s600 = sphi 0, %s584
  $region4: #{dur_encoder_forward.1} parent=0 // loop_header_branch
    %30 = sbr.rel (%p28) target = $region8
  $region5: #{dur_encoder_forward.1} parent=0 // loop_body
    %s32 = ssub.s32 %s27, 1
    %s33 = ssub.s32 %s27, 2
    %s40 = sadd.s32 1, %s35
    %p41 = scmp.ge.s32.totalorder %s40, 2
    %s42 = scalar_select %p41, 0, %s40
    %s43 = sadd.s32 1, %s34
    %s44 = scalar_select %p41, %s43, %s34
    %p45 = scmp.ge.s32.totalorder %s44, 2
    %s46 = scalar_select %p45, 0, %s44
    %s47 = ssub.s32 %s34, %s46
    %p48 = scmp.eq.s32.totalorder %s47, 0
    %s50 = sadd.s32 %s49, 1
    %s51 = scalar_select %p48, %s49, %s50
    %p54 = pneg %p48
    %p55 = scmp.eq.s32.totalorder %s27, 3
    %p56 = por %p54, %p55
    %p57 = scmp.ne.s32.totalorder %s49, %s52
    %p58 = scmp.eq.s32.totalorder %s27, 0
    %p59 = por %p57, %p58
    %p60 = scmp.ne.s32.totalorder %s49, %s52
    %p61 = scmp.eq.s32.totalorder %s32, 3
    %p62 = por %p60, %p61
    %p63 = scmp.ne.s32.totalorder %s52, %s53
    %p64 = scmp.eq.s32.totalorder %s32, 0
    %p65 = por %p63, %p64
    %p66 = scmp.ne.s32.totalorder %s52, %s53
    %p67 = scmp.eq.s32.totalorder %s33, 3
    %p68 = por %p66, %p67
    %p70 = scmp.ne.s32.totalorder %s53, %s69
    %p71 = scmp.eq.s32.totalorder %s33, 0
    %p72 = por %p70, %p71
    %s73 = ssub.s32 %s34, %s46
    %p74 = scmp.eq.s32.totalorder %s73, 0
    %s76 = sadd.s32 %s75, 1
    %s77 = scalar_select %p74, %s75, %s76
    %p80 = pneg %p74
    %p81 = scmp.eq.s32.totalorder %s27, 3
    %p82 = por %p80, %p81
    %p83 = scmp.ne.s32.totalorder %s75, %s78
    %p84 = scmp.eq.s32.totalorder %s27, 0
    %p85 = por %p83, %p84
    %p86 = scmp.ne.s32.totalorder %s75, %s78
    %p87 = scmp.eq.s32.totalorder %s32, 3
    %p88 = por %p86, %p87
    %p89 = scmp.ne.s32.totalorder %s78, %s79
    %p90 = scmp.eq.s32.totalorder %s32, 0
    %p91 = por %p89, %p90
    %p92 = scmp.ne.s32.totalorder %s78, %s79
    %p93 = scmp.eq.s32.totalorder %s33, 3
    %p94 = por %p92, %p93
    %p96 = scmp.ne.s32.totalorder %s79, %s95
    %p97 = scmp.eq.s32.totalorder %s33, 0
    %p98 = por %p96, %p97
    %s100 = sadd.s32 %s99, 1
    %p103 = scmp.eq.s32.totalorder %s27, 3
    %p104 = scmp.ne.s32.totalorder %s99, %s101
    %p105 = scmp.eq.s32.totalorder %s27, 0
    %p106 = por %p104, %p105
    %p107 = scmp.ne.s32.totalorder %s99, %s101
    %p108 = scmp.eq.s32.totalorder %s32, 3
    %p109 = por %p107, %p108
    %p110 = scmp.ne.s32.totalorder %s101, %s102
    %p111 = scmp.eq.s32.totalorder %s32, 0
    %p112 = por %p110, %p111
    %p113 = scmp.ne.s32.totalorder %s101, %s102
    %p114 = scmp.eq.s32.totalorder %s33, 3
    %p115 = por %p113, %p114
    %p117 = scmp.ne.s32.totalorder %s102, %s116
    %p118 = scmp.eq.s32.totalorder %s33, 0
    %p119 = por %p117, %p118
    %s120 = ssub.s32 %s35, %s42
    %p121 = scmp.eq.s32.totalorder %s120, 0
    %s123 = sadd.s32 %s122, 1
    %s124 = scalar_select %p121, %s122, %s123
    %p127 = pneg %p121
    %p128 = scmp.eq.s32.totalorder %s27, 3
    %p129 = por %p127, %p128
    %p130 = scmp.ne.s32.totalorder %s122, %s125
    %p131 = scmp.eq.s32.totalorder %s27, 0
    %p132 = por %p130, %p131
    %p133 = scmp.ne.s32.totalorder %s122, %s125
    %p134 = scmp.eq.s32.totalorder %s32, 3
    %p135 = por %p133, %p134
    %p136 = scmp.ne.s32.totalorder %s125, %s126
    %p137 = scmp.eq.s32.totalorder %s32, 0
    %p138 = por %p136, %p137
    %p139 = scmp.ne.s32.totalorder %s125, %s126
    %p140 = scmp.eq.s32.totalorder %s33, 3
    %p141 = por %p139, %p140
    %p143 = scmp.ne.s32.totalorder %s126, %s142
    %p144 = scmp.eq.s32.totalorder %s33, 0
    %p145 = por %p143, %p144
    %s146 = ssub.s32 %s35, %s42
    %p147 = scmp.eq.s32.totalorder %s146, 0
    %s149 = sadd.s32 %s148, 1
    %s150 = scalar_select %p147, %s148, %s149
    %p153 = pneg %p147
    %p154 = scmp.eq.s32.totalorder %s27, 3
    %p155 = por %p153, %p154
    %p156 = scmp.ne.s32.totalorder %s148, %s151
    %p157 = scmp.eq.s32.totalorder %s27, 0
    %p158 = por %p156, %p157
    %p159 = scmp.ne.s32.totalorder %s148, %s151
    %p160 = scmp.eq.s32.totalorder %s32, 3
    %p161 = por %p159, %p160
    %p162 = scmp.ne.s32.totalorder %s151, %s152
    %p163 = scmp.eq.s32.totalorder %s32, 0
    %p164 = por %p162, %p163
    %p165 = scmp.ne.s32.totalorder %s151, %s152
    %p166 = scmp.eq.s32.totalorder %s33, 3
    %p167 = por %p165, %p166
    %p169 = scmp.ne.s32.totalorder %s152, %s168
    %p170 = scmp.eq.s32.totalorder %s33, 0
    %p171 = por %p169, %p170
    %s172 = ssub.s32 %s35, %s42
    %p173 = scmp.eq.s32.totalorder %s172, 0
    %s175 = sadd.s32 %s174, 1
    %s176 = scalar_select %p173, %s174, %s175
    %p179 = pneg %p173
    %p180 = scmp.eq.s32.totalorder %s27, 3
    %p181 = por %p179, %p180
    %p182 = scmp.ne.s32.totalorder %s174, %s177
    %p183 = scmp.eq.s32.totalorder %s27, 0
    %p184 = por %p182, %p183
    %p185 = scmp.ne.s32.totalorder %s174, %s177
    %p186 = scmp.eq.s32.totalorder %s32, 3
    %p187 = por %p185, %p186
    %p188 = scmp.ne.s32.totalorder %s177, %s178
    %p189 = scmp.eq.s32.totalorder %s32, 0
    %p190 = por %p188, %p189
    %p191 = scmp.ne.s32.totalorder %s177, %s178
    %p192 = scmp.eq.s32.totalorder %s33, 3
    %p193 = por %p191, %p192
    %p195 = scmp.ne.s32.totalorder %s178, %s194
    %p196 = scmp.eq.s32.totalorder %s33, 0
    %p197 = por %p195, %p196
    %s198 = ssub.s32 %s35, %s42
    %p199 = scmp.eq.s32.totalorder %s198, 0
    %s201 = sadd.s32 %s200, 1
    %s202 = scalar_select %p199, %s200, %s201
    %p205 = pneg %p199
    %p206 = scmp.eq.s32.totalorder %s27, 3
    %p207 = por %p205, %p206
    %p208 = scmp.ne.s32.totalorder %s200, %s203
    %p209 = scmp.eq.s32.totalorder %s27, 0
    %p210 = por %p208, %p209
    %p211 = scmp.ne.s32.totalorder %s200, %s203
    %p212 = scmp.eq.s32.totalorder %s32, 3
    %p213 = por %p211, %p212
    %p214 = scmp.ne.s32.totalorder %s203, %s204
    %p215 = scmp.eq.s32.totalorder %s32, 0
    %p216 = por %p214, %p215
    %p217 = scmp.ne.s32.totalorder %s203, %s204
    %p218 = scmp.eq.s32.totalorder %s33, 3
    %p219 = por %p217, %p218
    %p221 = scmp.ne.s32.totalorder %s204, %s220
    %p222 = scmp.eq.s32.totalorder %s33, 0
    %p223 = por %p221, %p222
    %s224 = ssub.s32 %s35, %s42
    %p225 = scmp.eq.s32.totalorder %s224, 0
    %s227 = sadd.s32 %s226, 1
    %s228 = scalar_select %p225, %s226, %s227
    %p231 = pneg %p225
    %p232 = scmp.eq.s32.totalorder %s27, 3
    %p233 = por %p231, %p232
    %p234 = scmp.ne.s32.totalorder %s226, %s229
    %p235 = scmp.eq.s32.totalorder %s27, 0
    %p236 = por %p234, %p235
    %p237 = scmp.ne.s32.totalorder %s226, %s229
    %p238 = scmp.eq.s32.totalorder %s32, 3
    %p239 = por %p237, %p238
    %p240 = scmp.ne.s32.totalorder %s229, %s230
    %p241 = scmp.eq.s32.totalorder %s32, 0
    %p242 = por %p240, %p241
    %p243 = scmp.ne.s32.totalorder %s229, %s230
    %p244 = scmp.eq.s32.totalorder %s33, 3
    %p245 = por %p243, %p244
    %p247 = scmp.ne.s32.totalorder %s230, %s246
    %p248 = scmp.eq.s32.totalorder %s33, 0
    %p249 = por %p247, %p248
    %s250 = ssub.s32 %s35, %s42
    %p251 = scmp.eq.s32.totalorder %s250, 0
    %s253 = sadd.s32 %s252, 1
    %s254 = scalar_select %p251, %s252, %s253
    %p257 = pneg %p251
    %p258 = scmp.eq.s32.totalorder %s27, 3
    %p259 = por %p257, %p258
    %p260 = scmp.ne.s32.totalorder %s252, %s255
    %p261 = scmp.eq.s32.totalorder %s27, 0
    %p262 = por %p260, %p261
    %p263 = scmp.ne.s32.totalorder %s252, %s255
    %p264 = scmp.eq.s32.totalorder %s32, 3
    %p265 = por %p263, %p264
    %p266 = scmp.ne.s32.totalorder %s255, %s256
    %p267 = scmp.eq.s32.totalorder %s32, 0
    %p268 = por %p266, %p267
    %p269 = scmp.ne.s32.totalorder %s255, %s256
    %p270 = scmp.eq.s32.totalorder %s33, 3
    %p271 = por %p269, %p270
    %p273 = scmp.ne.s32.totalorder %s256, %s272
    %p274 = scmp.eq.s32.totalorder %s33, 0
    %p275 = por %p273, %p274
    %s276 = ssub.s32 %s35, %s42
    %p277 = scmp.eq.s32.totalorder %s276, 0
    %s279 = sadd.s32 %s278, 1
    %s280 = scalar_select %p277, %s278, %s279
    %p283 = pneg %p277
    %p284 = scmp.eq.s32.totalorder %s27, 3
    %p285 = por %p283, %p284
    %p286 = scmp.ne.s32.totalorder %s278, %s281
    %p287 = scmp.eq.s32.totalorder %s27, 0
    %p288 = por %p286, %p287
    %p289 = scmp.ne.s32.totalorder %s278, %s281
    %p290 = scmp.eq.s32.totalorder %s32, 3
    %p291 = por %p289, %p290
    %p292 = scmp.ne.s32.totalorder %s281, %s282
    %p293 = scmp.eq.s32.totalorder %s32, 0
    %p294 = por %p292, %p293
    %p295 = scmp.ne.s32.totalorder %s281, %s282
    %p296 = scmp.eq.s32.totalorder %s33, 3
    %p297 = por %p295, %p296
    %p299 = scmp.ne.s32.totalorder %s282, %s298
    %p300 = scmp.eq.s32.totalorder %s33, 0
    %p301 = por %p299, %p300
    %s302 = ssub.s32 %s35, %s42
    %p303 = scmp.eq.s32.totalorder %s302, 0
    %s305 = sadd.s32 %s304, 1
    %s306 = scalar_select %p303, %s304, %s305
    %p309 = pneg %p303
    %p310 = scmp.eq.s32.totalorder %s27, 3
    %p311 = por %p309, %p310
    %p312 = scmp.ne.s32.totalorder %s304, %s307
    %p313 = scmp.eq.s32.totalorder %s27, 0
    %p314 = por %p312, %p313
    %p315 = scmp.ne.s32.totalorder %s304, %s307
    %p316 = scmp.eq.s32.totalorder %s32, 3
    %p317 = por %p315, %p316
    %p318 = scmp.ne.s32.totalorder %s307, %s308
    %p319 = scmp.eq.s32.totalorder %s32, 0
    %p320 = por %p318, %p319
    %p321 = scmp.ne.s32.totalorder %s307, %s308
    %p322 = scmp.eq.s32.totalorder %s33, 3
    %p323 = por %p321, %p322
    %p325 = scmp.ne.s32.totalorder %s308, %s324
    %p326 = scmp.eq.s32.totalorder %s33, 0
    %p327 = por %p325, %p326
    %s328 = ssub.s32 %s35, %s42
    %p329 = scmp.eq.s32.totalorder %s328, 0
    %s331 = sadd.s32 %s330, 1
    %s332 = scalar_select %p329, %s330, %s331
    %p335 = pneg %p329
    %p336 = scmp.eq.s32.totalorder %s27, 3
    %p337 = por %p335, %p336
    %p338 = scmp.ne.s32.totalorder %s330, %s333
    %p339 = scmp.eq.s32.totalorder %s27, 0
    %p340 = por %p338, %p339
    %p341 = scmp.ne.s32.totalorder %s330, %s333
    %p342 = scmp.eq.s32.totalorder %s32, 3
    %p343 = por %p341, %p342
    %p344 = scmp.ne.s32.totalorder %s333, %s334
    %p345 = scmp.eq.s32.totalorder %s32, 0
    %p346 = por %p344, %p345
    %p347 = scmp.ne.s32.totalorder %s333, %s334
    %p348 = scmp.eq.s32.totalorder %s33, 3
    %p349 = por %p347, %p348
    %p351 = scmp.ne.s32.totalorder %s334, %s350
    %p352 = scmp.eq.s32.totalorder %s33, 0
    %p353 = por %p351, %p352
    %s354 = ssub.s32 %s35, %s42
    %p355 = scmp.eq.s32.totalorder %s354, 0
    %s357 = sadd.s32 %s356, 1
    %s358 = scalar_select %p355, %s356, %s357
    %p361 = pneg %p355
    %p362 = scmp.eq.s32.totalorder %s27, 3
    %p363 = por %p361, %p362
    %p364 = scmp.ne.s32.totalorder %s356, %s359
    %p365 = scmp.eq.s32.totalorder %s27, 0
    %p366 = por %p364, %p365
    %p367 = scmp.ne.s32.totalorder %s356, %s359
    %p368 = scmp.eq.s32.totalorder %s32, 3
    %p369 = por %p367, %p368
    %p370 = scmp.ne.s32.totalorder %s359, %s360
    %p371 = scmp.eq.s32.totalorder %s32, 0
    %p372 = por %p370, %p371
    %p373 = scmp.ne.s32.totalorder %s359, %s360
    %p374 = scmp.eq.s32.totalorder %s33, 3
    %p375 = por %p373, %p374
    %p377 = scmp.ne.s32.totalorder %s360, %s376
    %p378 = scmp.eq.s32.totalorder %s33, 0
    %p379 = por %p377, %p378
    %s380 = ssub.s32 %s35, %s42
    %p381 = scmp.eq.s32.totalorder %s380, 0
    %s383 = sadd.s32 %s382, 1
    %s384 = scalar_select %p381, %s382, %s383
    %p387 = pneg %p381
    %p388 = scmp.eq.s32.totalorder %s27, 3
    %p389 = por %p387, %p388
    %p390 = scmp.ne.s32.totalorder %s382, %s385
    %p391 = scmp.eq.s32.totalorder %s27, 0
    %p392 = por %p390, %p391
    %p393 = scmp.ne.s32.totalorder %s382, %s385
    %p394 = scmp.eq.s32.totalorder %s32, 3
    %p395 = por %p393, %p394
    %p396 = scmp.ne.s32.totalorder %s385, %s386
    %p397 = scmp.eq.s32.totalorder %s32, 0
    %p398 = por %p396, %p397
    %p399 = scmp.ne.s32.totalorder %s385, %s386
    %p400 = scmp.eq.s32.totalorder %s33, 3
    %p401 = por %p399, %p400
    %p403 = scmp.ne.s32.totalorder %s386, %s402
    %p404 = scmp.eq.s32.totalorder %s33, 0
    %p405 = por %p403, %p404
    %s406 = ssub.s32 %s35, %s42
    %p407 = scmp.eq.s32.totalorder %s406, 0
    %s409 = sadd.s32 %s408, 1
    %s410 = scalar_select %p407, %s408, %s409
    %p413 = pneg %p407
    %p414 = scmp.eq.s32.totalorder %s27, 3
    %p415 = por %p413, %p414
    %p416 = scmp.ne.s32.totalorder %s408, %s411
    %p417 = scmp.eq.s32.totalorder %s27, 0
    %p418 = por %p416, %p417
    %p419 = scmp.ne.s32.totalorder %s408, %s411
    %p420 = scmp.eq.s32.totalorder %s32, 3
    %p421 = por %p419, %p420
    %p422 = scmp.ne.s32.totalorder %s411, %s412
    %p423 = scmp.eq.s32.totalorder %s32, 0
    %p424 = por %p422, %p423
    %p425 = scmp.ne.s32.totalorder %s411, %s412
    %p426 = scmp.eq.s32.totalorder %s33, 3
    %p427 = por %p425, %p426
    %p429 = scmp.ne.s32.totalorder %s412, %s428
    %p430 = scmp.eq.s32.totalorder %s33, 0
    %p431 = por %p429, %p430
    %s432 = ssub.s32 %s35, %s42
    %p433 = scmp.eq.s32.totalorder %s432, 0
    %s435 = sadd.s32 %s434, 1
    %s436 = scalar_select %p433, %s434, %s435
    %p439 = pneg %p433
    %p440 = scmp.eq.s32.totalorder %s27, 3
    %p441 = por %p439, %p440
    %p442 = scmp.ne.s32.totalorder %s434, %s437
    %p443 = scmp.eq.s32.totalorder %s27, 0
    %p444 = por %p442, %p443
    %p445 = scmp.ne.s32.totalorder %s434, %s437
    %p446 = scmp.eq.s32.totalorder %s32, 3
    %p447 = por %p445, %p446
    %p448 = scmp.ne.s32.totalorder %s437, %s438
    %p449 = scmp.eq.s32.totalorder %s32, 0
    %p450 = por %p448, %p449
    %p451 = scmp.ne.s32.totalorder %s437, %s438
    %p452 = scmp.eq.s32.totalorder %s33, 3
    %p453 = por %p451, %p452
    %p455 = scmp.ne.s32.totalorder %s438, %s454
    %p456 = scmp.eq.s32.totalorder %s33, 0
    %p457 = por %p455, %p456
    %s458 = ssub.s32 %s35, %s42
    %p459 = scmp.eq.s32.totalorder %s458, 0
    %s461 = sadd.s32 %s460, 1
    %s462 = scalar_select %p459, %s460, %s461
    %p465 = pneg %p459
    %p466 = scmp.eq.s32.totalorder %s27, 3
    %p467 = por %p465, %p466
    %p468 = scmp.ne.s32.totalorder %s460, %s463
    %p469 = scmp.eq.s32.totalorder %s27, 0
    %p470 = por %p468, %p469
    %p471 = scmp.ne.s32.totalorder %s460, %s463
    %p472 = scmp.eq.s32.totalorder %s32, 3
    %p473 = por %p471, %p472
    %p474 = scmp.ne.s32.totalorder %s463, %s464
    %p475 = scmp.eq.s32.totalorder %s32, 0
    %p476 = por %p474, %p475
    %p477 = scmp.ne.s32.totalorder %s463, %s464
    %p478 = scmp.eq.s32.totalorder %s33, 3
    %p479 = por %p477, %p478
    %p481 = scmp.ne.s32.totalorder %s464, %s480
    %p482 = scmp.eq.s32.totalorder %s33, 0
    %p483 = por %p481, %p482
    %s484 = ssub.s32 %s35, %s42
    %p485 = scmp.eq.s32.totalorder %s484, 0
    %s487 = sadd.s32 %s486, 1
    %s488 = scalar_select %p485, %s486, %s487
    %p491 = pneg %p485
    %p492 = scmp.eq.s32.totalorder %s27, 3
    %p493 = por %p491, %p492
    %p494 = scmp.ne.s32.totalorder %s486, %s489
    %p495 = scmp.eq.s32.totalorder %s27, 0
    %p496 = por %p494, %p495
    %p497 = scmp.ne.s32.totalorder %s486, %s489
    %p498 = scmp.eq.s32.totalorder %s32, 3
    %p499 = por %p497, %p498
    %p500 = scmp.ne.s32.totalorder %s489, %s490
    %p501 = scmp.eq.s32.totalorder %s32, 0
    %p502 = por %p500, %p501
    %p503 = scmp.ne.s32.totalorder %s489, %s490
    %p504 = scmp.eq.s32.totalorder %s33, 3
    %p505 = por %p503, %p504
    %p507 = scmp.ne.s32.totalorder %s490, %s506
    %p508 = scmp.eq.s32.totalorder %s33, 0
    %p509 = por %p507, %p508
    %s510 = ssub.s32 %s35, %s42
    %p511 = scmp.eq.s32.totalorder %s510, 0
    %s513 = sadd.s32 %s512, 1
    %s514 = scalar_select %p511, %s512, %s513
    %p517 = pneg %p511
    %p518 = scmp.eq.s32.totalorder %s27, 3
    %p519 = por %p517, %p518
    %p520 = scmp.ne.s32.totalorder %s512, %s515
    %p521 = scmp.eq.s32.totalorder %s27, 0
    %p522 = por %p520, %p521
    %p523 = scmp.ne.s32.totalorder %s512, %s515
    %p524 = scmp.eq.s32.totalorder %s32, 3
    %p525 = por %p523, %p524
    %p526 = scmp.ne.s32.totalorder %s515, %s516
    %p527 = scmp.eq.s32.totalorder %s32, 0
    %p528 = por %p526, %p527
    %p529 = scmp.ne.s32.totalorder %s515, %s516
    %p530 = scmp.eq.s32.totalorder %s33, 3
    %p531 = por %p529, %p530
    %p533 = scmp.ne.s32.totalorder %s516, %s532
    %p534 = scmp.eq.s32.totalorder %s33, 0
    %p535 = por %p533, %p534
    %s537 = sadd.s32 %s536, 1
    %p540 = scmp.eq.s32.totalorder %s27, 3
    %p541 = scmp.ne.s32.totalorder %s536, %s538
    %p542 = scmp.eq.s32.totalorder %s27, 0
    %p543 = por %p541, %p542
    %p544 = scmp.ne.s32.totalorder %s536, %s538
    %p545 = scmp.eq.s32.totalorder %s32, 3
    %p546 = por %p544, %p545
    %p547 = scmp.ne.s32.totalorder %s538, %s539
    %p548 = scmp.eq.s32.totalorder %s32, 0
    %p549 = por %p547, %p548
    %p550 = scmp.ne.s32.totalorder %s538, %s539
    %p551 = scmp.eq.s32.totalorder %s33, 3
    %p552 = por %p550, %p551
    %p554 = scmp.ne.s32.totalorder %s539, %s553
    %p555 = scmp.eq.s32.totalorder %s33, 0
    %p556 = por %p554, %p555
    %s558 = sadd.s32 %s557, 1
    %p561 = scmp.eq.s32.totalorder %s27, 3
    %p562 = scmp.ne.s32.totalorder %s557, %s559
    %p563 = scmp.eq.s32.totalorder %s27, 0
    %p564 = por %p562, %p563
    %p565 = scmp.ne.s32.totalorder %s557, %s559
    %p566 = scmp.eq.s32.totalorder %s32, 3
    %p567 = por %p565, %p566
    %p568 = scmp.ne.s32.totalorder %s559, %s560
    %p569 = scmp.eq.s32.totalorder %s32, 0
    %p570 = por %p568, %p569
    %p571 = scmp.ne.s32.totalorder %s559, %s560
    %p572 = scmp.eq.s32.totalorder %s33, 3
    %p573 = por %p571, %p572
    %p575 = scmp.ne.s32.totalorder %s560, %s574
    %p576 = scmp.eq.s32.totalorder %s33, 0
    %p577 = por %p575, %p576
    %s578 = ssub.s32 %s34, %s46
    %p579 = scmp.eq.s32.totalorder %s578, 0
    %s581 = sadd.s32 %s580, 1
    %s582 = scalar_select %p579, %s580, %s581
    %p585 = pneg %p579
    %p586 = scmp.eq.s32.totalorder %s27, 3
    %p587 = por %p585, %p586
    %p588 = scmp.ne.s32.totalorder %s580, %s583
    %p589 = scmp.eq.s32.totalorder %s27, 0
    %p590 = por %p588, %p589
    %p591 = scmp.ne.s32.totalorder %s580, %s583
    %p592 = scmp.eq.s32.totalorder %s32, 3
    %p593 = por %p591, %p592
    %p594 = scmp.ne.s32.totalorder %s583, %s584
    %p595 = scmp.eq.s32.totalorder %s32, 0
    %p596 = por %p594, %p595
    %p597 = scmp.ne.s32.totalorder %s583, %s584
    %p598 = scmp.eq.s32.totalorder %s33, 3
    %p599 = por %p597, %p598
    %p601 = scmp.ne.s32.totalorder %s584, %s600
    %p602 = scmp.eq.s32.totalorder %s33, 0
    %p603 = por %p601, %p602
    %p604 = scmp.le.s32.totalorder 1, %s27
    %p605 = scmp.lt.s32.totalorder %s27, 5
    %p606 = pnand %p604, %p605
    %p607 = pneg %p606
    // Predicated region
    $region9: #{dur_encoder_forward.1} parent=5 // pred_check
      _
    $region10: #{dur_encoder_forward.1} parent=5 // pred_check_branch
      %609 = sbr.rel (%p606) target = $region12
    $region11: #{dur_encoder_forward.1} parent=5 // pred_region
      %s610 = ssub.s32 %s27, 1
      // Predicated region
      $region13: #{dur_encoder_forward.1} parent=11 // pred_check
        %p611 = pneg %p112
      $region14: #{dur_encoder_forward.1} parent=11 // pred_check_branch
        %613 = sbr.rel (%p611) target = $region16
      $region15: #{dur_encoder_forward.1} parent=11 // pred_region
        _
      $region16: #{dur_encoder_forward.1} parent=11 // pred_fallthru
        _
      // Predicated region
      $region17: #{dur_encoder_forward.1} parent=11 // pred_check
        %p614 = pneg %p549
      $region18: #{dur_encoder_forward.1} parent=11 // pred_check_branch
        %616 = sbr.rel (%p614) target = $region20
      $region19: #{dur_encoder_forward.1} parent=11 // pred_region
        _
      $region20: #{dur_encoder_forward.1} parent=11 // pred_fallthru
        _
      // Predicated region
      $region21: #{dur_encoder_forward.1} parent=11 // pred_check
        %p617 = pneg %p570
      $region22: #{dur_encoder_forward.1} parent=11 // pred_check_branch
        %619 = sbr.rel (%p617) target = $region24
      $region23: #{dur_encoder_forward.1} parent=11 // pred_region
        _
      $region24: #{dur_encoder_forward.1} parent=11 // pred_fallthru
        _
    $region12: #{dur_encoder_forward.1} parent=5 // pred_fallthru
      _
    %p620 = scmp.lt.s32.totalorder %s27, 4
    // Predicated region
    $region25: #{dur_encoder_forward.1} parent=5 // pred_check
      %p621 = pneg %p620
    $region26: #{dur_encoder_forward.1} parent=5 // pred_check_branch
      %623 = sbr.rel (%p621) target = $region28
    $region27: #{dur_encoder_forward.1} parent=5 // pred_region
      // Predicated region
      $region29: #{dur_encoder_forward.1} parent=27 // pred_check
        %p624 = pneg %p59
      $region30: #{dur_encoder_forward.1} parent=27 // pred_check_branch
        %626 = sbr.rel (%p624) target = $region32
      $region31: #{dur_encoder_forward.1} parent=27 // pred_region
        %p627 = scmp.lt.s32.totalorder %s34, 1
        %s628 = scalar_select %p627, %s34, 1
        %s629 = smul.addr %s628, 8
        %s630 = scalar_lea.vmem %s0, %s629
      $region32: #{dur_encoder_forward.1} parent=27 // pred_fallthru
        _
      // Predicated region
      $region33: #{dur_encoder_forward.1} parent=27 // pred_check
        %p631 = pneg %p85
      $region34: #{dur_encoder_forward.1} parent=27 // pred_check_branch
        %633 = sbr.rel (%p631) target = $region36
      $region35: #{dur_encoder_forward.1} parent=27 // pred_region
        %p634 = scmp.lt.s32.totalorder %s34, 1
        %s635 = scalar_select %p634, %s34, 1
        %s636 = scalar_lea.vmem %s1, %s635
      $region36: #{dur_encoder_forward.1} parent=27 // pred_fallthru
        _
      // Predicated region
      $region37: #{dur_encoder_forward.1} parent=27 // pred_check
        %p637 = pneg %p132
      $region38: #{dur_encoder_forward.1} parent=27 // pred_check_branch
        %639 = sbr.rel (%p637) target = $region40
      $region39: #{dur_encoder_forward.1} parent=27 // pred_region
        %p640 = scmp.lt.s32.totalorder %s35, 1
        %s641 = scalar_select %p640, %s35, 1
        %s642 = smul.addr %s641, 4
        %s643 = smul.addr %s642, 4
        %s644 = scalar_lea.vmem %s3, %s643
      $region40: #{dur_encoder_forward.1} parent=27 // pred_fallthru
        _
      // Predicated region
      $region41: #{dur_encoder_forward.1} parent=27 // pred_check
        %p645 = pneg %p158
      $region42: #{dur_encoder_forward.1} parent=27 // pred_check_branch
        %647 = sbr.rel (%p645) target = $region44
      $region43: #{dur_encoder_forward.1} parent=27 // pred_region
        %p648 = scmp.lt.s32.totalorder %s35, 1
        %s649 = scalar_select %p648, %s35, 1
        %s650 = scalar_lea.vmem %s4, %s649
      $region44: #{dur_encoder_forward.1} parent=27 // pred_fallthru
        _
      // Predicated region
      $region45: #{dur_encoder_forward.1} parent=27 // pred_check
        %p651 = pneg %p184
      $region46: #{dur_encoder_forward.1} parent=27 // pred_check_branch
        %653 = sbr.rel (%p651) target = $region48
      $region47: #{dur_encoder_forward.1} parent=27 // pred_region
        %p654 = scmp.lt.s32.totalorder %s35, 1
        %s655 = scalar_select %p654, %s35, 1
        %s656 = smul.addr %s655, 4
        %s657 = smul.addr %s656, 4
        %s658 = scalar_lea.vmem %s5, %s657
      $region48: #{dur_encoder_forward.1} parent=27 // pred_fallthru
        _
      // Predicated region
      $region49: #{dur_encoder_forward.1} parent=27 // pred_check
        %p659 = pneg %p210
      $region50: #{dur_encoder_forward.1} parent=27 // pred_check_branch
        %661 = sbr.rel (%p659) target = $region52
      $region51: #{dur_encoder_forward.1} parent=27 // pred_region
        %p662 = scmp.lt.s32.totalorder %s35, 1
        %s663 = scalar_select %p662, %s35, 1
        %s664 = scalar_lea.vmem %s6, %s663
      $region52: #{dur_encoder_forward.1} parent=27 // pred_fallthru
        _
      // Predicated region
      $region53: #{dur_encoder_forward.1} parent=27 // pred_check
        %p665 = pneg %p236
      $region54: #{dur_encoder_forward.1} parent=27 // pred_check_branch
        %667 = sbr.rel (%p665) target = $region56
      $region55: #{dur_encoder_forward.1} parent=27 // pred_region
        %p668 = scmp.lt.s32.totalorder %s35, 1
        %s669 = scalar_select %p668, %s35, 1
        %s670 = smul.addr %s669, 4
        %s671 = smul.addr %s670, 4
        %s672 = scalar_lea.vmem %s7, %s671
      $region56: #{dur_encoder_forward.1} parent=27 // pred_fallthru
        _
      // Predicated region
      $region57: #{dur_encoder_forward.1} parent=27 // pred_check
        %p673 = pneg %p262
      $region58: #{dur_encoder_forward.1} parent=27 // pred_check_branch
        %675 = sbr.rel (%p673) target = $region60
      $region59: #{dur_encoder_forward.1} parent=27 // pred_region
        %p676 = scmp.lt.s32.totalorder %s35, 1
        %s677 = scalar_select %p676, %s35, 1
        %s678 = scalar_lea.vmem %s8, %s677
      $region60: #{dur_encoder_forward.1} parent=27 // pred_fallthru
        _
      // Predicated region
      $region61: #{dur_encoder_forward.1} parent=27 // pred_check
        %p679 = pneg %p288
      $region62: #{dur_encoder_forward.1} parent=27 // pred_check_branch
        %681 = sbr.rel (%p679) target = $region64
      $region63: #{dur_encoder_forward.1} parent=27 // pred_region
        %p682 = scmp.lt.s32.totalorder %s35, 1
        %s683 = scalar_select %p682, %s35, 1
        %s684 = smul.addr %s683, 4
        %s685 = smul.addr %s684, 4
        %s686 = scalar_lea.vmem %s9, %s685
      $region64: #{dur_encoder_forward.1} parent=27 // pred_fallthru
        _
      // Predicated region
      $region65: #{dur_encoder_forward.1} parent=27 // pred_check
        %p687 = pneg %p314
      $region66: #{dur_encoder_forward.1} parent=27 // pred_check_branch
        %689 = sbr.rel (%p687) target = $region68
      $region67: #{dur_encoder_forward.1} parent=27 // pred_region
        %p690 = scmp.lt.s32.totalorder %s35, 1
        %s691 = scalar_select %p690, %s35, 1
        %s692 = scalar_lea.vmem %s10, %s691
      $region68: #{dur_encoder_forward.1} parent=27 // pred_fallthru
        _
      // Predicated region
      $region69: #{dur_encoder_forward.1} parent=27 // pred_check
        %p693 = pneg %p340
      $region70: #{dur_encoder_forward.1} parent=27 // pred_check_branch
        %695 = sbr.rel (%p693) target = $region72
      $region71: #{dur_encoder_forward.1} parent=27 // pred_region
        %p696 = scmp.lt.s32.totalorder %s35, 1
        %s697 = scalar_select %p696, %s35, 1
        %s698 = scalar_lea.vmem %s11, %s697
      $region72: #{dur_encoder_forward.1} parent=27 // pred_fallthru
        _
      // Predicated region
      $region73: #{dur_encoder_forward.1} parent=27 // pred_check
        %p699 = pneg %p366
      $region74: #{dur_encoder_forward.1} parent=27 // pred_check_branch
        %701 = sbr.rel (%p699) target = $region76
      $region75: #{dur_encoder_forward.1} parent=27 // pred_region
        %p702 = scmp.lt.s32.totalorder %s35, 1
        %s703 = scalar_select %p702, %s35, 1
        %s704 = scalar_lea.vmem %s12, %s703
      $region76: #{dur_encoder_forward.1} parent=27 // pred_fallthru
        _
      // Predicated region
      $region77: #{dur_encoder_forward.1} parent=27 // pred_check
        %p705 = pneg %p392
      $region78: #{dur_encoder_forward.1} parent=27 // pred_check_branch
        %707 = sbr.rel (%p705) target = $region80
      $region79: #{dur_encoder_forward.1} parent=27 // pred_region
        %p708 = scmp.lt.s32.totalorder %s35, 1
        %s709 = scalar_select %p708, %s35, 1
        %s710 = smul.addr %s709, 4
        %s711 = smul.addr %s710, 4
        %s712 = scalar_lea.vmem %s13, %s711
      $region80: #{dur_encoder_forward.1} parent=27 // pred_fallthru
        _
      // Predicated region
      $region81: #{dur_encoder_forward.1} parent=27 // pred_check
        %p713 = pneg %p418
      $region82: #{dur_encoder_forward.1} parent=27 // pred_check_branch
        %715 = sbr.rel (%p713) target = $region84
      $region83: #{dur_encoder_forward.1} parent=27 // pred_region
        %p716 = scmp.lt.s32.totalorder %s35, 1
        %s717 = scalar_select %p716, %s35, 1
        %s718 = scalar_lea.vmem %s14, %s717
      $region84: #{dur_encoder_forward.1} parent=27 // pred_fallthru
        _
      // Predicated region
      $region85: #{dur_encoder_forward.1} parent=27 // pred_check
        %p719 = pneg %p444
      $region86: #{dur_encoder_forward.1} parent=27 // pred_check_branch
        %721 = sbr.rel (%p719) target = $region88
      $region87: #{dur_encoder_forward.1} parent=27 // pred_region
        %p722 = scmp.lt.s32.totalorder %s35, 1
        %s723 = scalar_select %p722, %s35, 1
        %s724 = smul.addr %s723, 8
        %s725 = smul.addr %s724, 4
        %s726 = scalar_lea.vmem %s15, %s725
      $region88: #{dur_encoder_forward.1} parent=27 // pred_fallthru
        _
      // Predicated region
      $region89: #{dur_encoder_forward.1} parent=27 // pred_check
        %p727 = pneg %p470
      $region90: #{dur_encoder_forward.1} parent=27 // pred_check_branch
        %729 = sbr.rel (%p727) target = $region92
      $region91: #{dur_encoder_forward.1} parent=27 // pred_region
        %p730 = scmp.lt.s32.totalorder %s35, 1
        %s731 = scalar_select %p730, %s35, 1
        %s732 = scalar_lea.vmem %s16, %s731
      $region92: #{dur_encoder_forward.1} parent=27 // pred_fallthru
        _
      // Predicated region
      $region93: #{dur_encoder_forward.1} parent=27 // pred_check
        %p733 = pneg %p496
      $region94: #{dur_encoder_forward.1} parent=27 // pred_check_branch
        %735 = sbr.rel (%p733) target = $region96
      $region95: #{dur_encoder_forward.1} parent=27 // pred_region
        %p736 = scmp.lt.s32.totalorder %s35, 1
        %s737 = scalar_select %p736, %s35, 1
        %s738 = scalar_lea.vmem %s17, %s737
      $region96: #{dur_encoder_forward.1} parent=27 // pred_fallthru
        _
      // Predicated region
      $region97: #{dur_encoder_forward.1} parent=27 // pred_check
        %p739 = pneg %p522
      $region98: #{dur_encoder_forward.1} parent=27 // pred_check_branch
        %741 = sbr.rel (%p739) target = $region100
      $region99: #{dur_encoder_forward.1} parent=27 // pred_region
        %p742 = scmp.lt.s32.totalorder %s35, 1
        %s743 = scalar_select %p742, %s35, 1
        %s744 = scalar_lea.vmem %s18, %s743
      $region100: #{dur_encoder_forward.1} parent=27 // pred_fallthru
        _
    $region28: #{dur_encoder_forward.1} parent=5 // pred_fallthru
      _
    %p745 = scmp.le.s32.totalorder 1, %s27
    %p746 = scmp.lt.s32.totalorder %s27, 5
    %p747 = pnand %p745, %p746
    %p748 = pneg %p747
    // Predicated region
    $region101: #{dur_encoder_forward.1} parent=5 // pred_check
      _
    $region102: #{dur_encoder_forward.1} parent=5 // pred_check_branch
      %750 = sbr.rel (%p747) target = $region104
    $region103: #{dur_encoder_forward.1} parent=5 // pred_region
      %s751 = ssub.s32 %s27, 1
      %p752 = scmp.lt.s32.totalorder %s36, 1
      %s753 = scalar_select %p752, %s36, 1
      %s754 = smul.addr %s753, 8
      %s755 = scalar_lea.vmem %s0, %s754
      %p756 = pneg %p65
      %p757 = pneg %p62
      %p758 = scmp.lt.s32.totalorder %s36, 1
      %s759 = scalar_select %p758, %s36, 1
      %s760 = scalar_lea.vmem %s1, %s759
      %p761 = pneg %p91
      %p762 = pneg %p88
      %p763 = pneg %p112
      %p764 = pneg %p109
      %p765 = scmp.lt.s32.totalorder %s37, 1
      %s766 = scalar_select %p765, %s37, 1
      %s767 = smul.addr %s766, 4
      %s768 = smul.addr %s767, 4
      %s769 = scalar_lea.vmem %s3, %s768
      %p770 = pneg %p138
      %p771 = pneg %p135
      %p772 = scmp.lt.s32.totalorder %s37, 1
      %s773 = scalar_select %p772, %s37, 1
      %s774 = scalar_lea.vmem %s4, %s773
      %p775 = pneg %p164
      %p776 = pneg %p161
      %p777 = scmp.lt.s32.totalorder %s37, 1
      %s778 = scalar_select %p777, %s37, 1
      %s779 = smul.addr %s778, 4
      %s780 = smul.addr %s779, 4
      %s781 = scalar_lea.vmem %s5, %s780
      %p782 = pneg %p190
      %p783 = pneg %p187
      %p784 = scmp.lt.s32.totalorder %s37, 1
      %s785 = scalar_select %p784, %s37, 1
      %s786 = scalar_lea.vmem %s6, %s785
      %p787 = pneg %p216
      %p788 = pneg %p213
      %p789 = scmp.lt.s32.totalorder %s37, 1
      %s790 = scalar_select %p789, %s37, 1
      %s791 = smul.addr %s790, 4
      %s792 = smul.addr %s791, 4
      %s793 = scalar_lea.vmem %s7, %s792
      %p794 = pneg %p242
      %p795 = pneg %p239
      %p796 = scmp.lt.s32.totalorder %s37, 1
      %s797 = scalar_select %p796, %s37, 1
      %s798 = scalar_lea.vmem %s8, %s797
      %p799 = pneg %p268
      %p800 = pneg %p265
      %p801 = scmp.lt.s32.totalorder %s37, 1
      %s802 = scalar_select %p801, %s37, 1
      %s803 = smul.addr %s802, 4
      %s804 = smul.addr %s803, 4
      %s805 = scalar_lea.vmem %s9, %s804
      %p806 = pneg %p294
      %p807 = pneg %p291
      %p808 = scmp.lt.s32.totalorder %s37, 1
      %s809 = scalar_select %p808, %s37, 1
      %s810 = scalar_lea.vmem %s10, %s809
      %p811 = pneg %p320
      %p812 = pneg %p317
      %p813 = scmp.lt.s32.totalorder %s37, 1
      %s814 = scalar_select %p813, %s37, 1
      %s815 = scalar_lea.vmem %s11, %s814
      %p816 = pneg %p346
      %p817 = pneg %p343
      %p818 = scmp.lt.s32.totalorder %s37, 1
      %s819 = scalar_select %p818, %s37, 1
      %s820 = scalar_lea.vmem %s12, %s819
      %p821 = pneg %p372
      %p822 = pneg %p369
      %p823 = scmp.lt.s32.totalorder %s37, 1
      %s824 = scalar_select %p823, %s37, 1
      %s825 = smul.addr %s824, 4
      %s826 = smul.addr %s825, 4
      %s827 = scalar_lea.vmem %s13, %s826
      %p828 = pneg %p398
      %p829 = pneg %p395
      %p830 = scmp.lt.s32.totalorder %s37, 1
      %s831 = scalar_select %p830, %s37, 1
      %s832 = scalar_lea.vmem %s14, %s831
      %p833 = pneg %p424
      %p834 = pneg %p421
      %p835 = scmp.lt.s32.totalorder %s37, 1
      %s836 = scalar_select %p835, %s37, 1
      %s837 = smul.addr %s836, 8
      %s838 = smul.addr %s837, 4
      %s839 = scalar_lea.vmem %s15, %s838
      %p840 = pneg %p450
      %p841 = pneg %p447
      %p842 = scmp.lt.s32.totalorder %s37, 1
      %s843 = scalar_select %p842, %s37, 1
      %s844 = scalar_lea.vmem %s16, %s843
      %p845 = pneg %p476
      %p846 = pneg %p473
      %p847 = scmp.lt.s32.totalorder %s37, 1
      %s848 = scalar_select %p847, %s37, 1
      %s849 = scalar_lea.vmem %s17, %s848
      %p850 = pneg %p502
      %p851 = pneg %p499
      %p852 = scmp.lt.s32.totalorder %s37, 1
      %s853 = scalar_select %p852, %s37, 1
      %s854 = scalar_lea.vmem %s18, %s853
      %p855 = pneg %p528
      %p856 = pneg %p525
      %p857 = pneg %p549
      %p858 = pneg %p546
      %p859 = pneg %p570
      %p860 = pneg %p567
      %p861 = pneg %p596
      %p862 = pneg %p593
      %p863 = scmp.lt.s32.totalorder %s36, 1
      %s864 = scalar_select %p863, %s36, 1
      %s865 = smul.addr %s864, 2
      %s866 = smul.addr %s865, 8
      %s867 = scalar_lea.vmem %s21, %s866
      %p868 = scmp.lt.s32.totalorder %s36, 1
      %s869 = scalar_select %p868, %s36, 1
      %s870 = smul.addr %s869, 8
      %s871 = scalar_lea.vmem %s0, %s870
      %p872 = scmp.lt.s32.totalorder %s36, 1
      %s873 = scalar_select %p872, %s36, 1
      %s874 = scalar_lea.vmem %s1, %s873
      %p875 = scmp.lt.s32.totalorder %s37, 1
      %s876 = scalar_select %p875, %s37, 1
      %s877 = smul.addr %s876, 4
      %s878 = smul.addr %s877, 4
      %s879 = scalar_lea.vmem %s3, %s878
      %p880 = scmp.lt.s32.totalorder %s37, 1
      %s881 = scalar_select %p880, %s37, 1
      %s882 = scalar_lea.vmem %s4, %s881
      %p883 = scmp.lt.s32.totalorder %s37, 1
      %s884 = scalar_select %p883, %s37, 1
      %s885 = smul.addr %s884, 4
      %s886 = smul.addr %s885, 4
      %s887 = scalar_lea.vmem %s5, %s886
      %p888 = scmp.lt.s32.totalorder %s37, 1
      %s889 = scalar_select %p888, %s37, 1
      %s890 = scalar_lea.vmem %s6, %s889
      %p891 = scmp.lt.s32.totalorder %s37, 1
      %s892 = scalar_select %p891, %s37, 1
      %s893 = smul.addr %s892, 4
      %s894 = smul.addr %s893, 4
      %s895 = scalar_lea.vmem %s7, %s894
      %p896 = scmp.lt.s32.totalorder %s37, 1
      %s897 = scalar_select %p896, %s37, 1
      %s898 = scalar_lea.vmem %s8, %s897
      %p899 = scmp.lt.s32.totalorder %s37, 1
      %s900 = scalar_select %p899, %s37, 1
      %s901 = smul.addr %s900, 4
      %s902 = smul.addr %s901, 4
      %s903 = scalar_lea.vmem %s9, %s902
      %p904 = scmp.lt.s32.totalorder %s37, 1
      %s905 = scalar_select %p904, %s37, 1
      %s906 = scalar_lea.vmem %s10, %s905
      %p907 = scmp.lt.s32.totalorder %s37, 1
      %s908 = scalar_select %p907, %s37, 1
      %s909 = scalar_lea.vmem %s11, %s908
      %p910 = scmp.lt.s32.totalorder %s37, 1
      %s911 = scalar_select %p910, %s37, 1
      %s912 = scalar_lea.vmem %s12, %s911
      %p913 = scmp.lt.s32.totalorder %s37, 1
      %s914 = scalar_select %p913, %s37, 1
      %s915 = smul.addr %s914, 4
      %s916 = smul.addr %s915, 4
      %s917 = scalar_lea.vmem %s13, %s916
      %p918 = scmp.lt.s32.totalorder %s37, 1
      %s919 = scalar_select %p918, %s37, 1
      %s920 = scalar_lea.vmem %s14, %s919
      %p921 = scmp.lt.s32.totalorder %s37, 1
      %s922 = scalar_select %p921, %s37, 1
      %s923 = smul.addr %s922, 8
      %s924 = smul.addr %s923, 4
      %s925 = scalar_lea.vmem %s15, %s924
      %p926 = scmp.lt.s32.totalorder %s37, 1
      %s927 = scalar_select %p926, %s37, 1
      %s928 = scalar_lea.vmem %s16, %s927
      %p929 = scmp.lt.s32.totalorder %s37, 1
      %s930 = scalar_select %p929, %s37, 1
      %s931 = scalar_lea.vmem %s17, %s930
      %p932 = scmp.lt.s32.totalorder %s37, 1
      %s933 = scalar_select %p932, %s37, 1
      %s934 = scalar_lea.vmem %s18, %s933
      %p935 = scmp.lt.s32.totalorder %s36, 1
      %s936 = scalar_select %p935, %s36, 1
      %s937 = smul.addr %s936, 2
      %s938 = smul.addr %s937, 8
      %s939 = scalar_lea.vmem %s21, %s938
      %p941 = scmp.eq.s32.totalorder %s37, 0
      // Predicated region
      $region105: #{dur_encoder_forward.1} parent=103 // pred_check
        %p942 = pneg %p941
      $region106: #{dur_encoder_forward.1} parent=103 // pred_check_branch
        %944 = sbr.rel (%p942) target = $region108
      $region107: #{dur_encoder_forward.1} parent=103 // pred_region
        %v945 = vld [vmem:[%s871] sm:$0xff]
        %v946 = vmul.f32 %v945, 5.656854
        %v947 = vld [vmem:[%s2] sm:$0xff]
        %v948 = vadd.f32 %v946, %v947
        %vm949 = vcmask 261120
        %950 = vst.msk [vmem:[#allocation2] sm:$0xff] %vm949, %v948
      $region108: #{dur_encoder_forward.1} parent=103 // pred_fallthru
        _
      %v951 = vld [vmem:[#allocation2] sm:$0xff]
      %v952 = vpack.c.bf16 %v951, %v951
      %v953 = vld [vmem:[%s874] sm:$0x1]
      %v954 = vmul.f32 %v953, 1e+09
      %v955 = vld [vmem:[%s879] sm:$0xf]
      %v956 = vld [vmem:[%s879 + $0x4] sm:$0xf]
      %v957 = vld [vmem:[%s879 + $0x8] sm:$0xf]
      %v958 = vld [vmem:[%s879 + $0xc] sm:$0xf]
      %v959 = vld [vmem:[%s882] sm:$0x1]
      %v961 = vperm.slane %v959, 0
      %v967 = vunpack.c.l.b16 %v955
      %v968 = vunpack.c.l.b16 %v956
      %v969 = vunpack.c.l.b16 %v957
      %v970 = vunpack.c.l.b16 %v958
      %v971 = vpack.c.b16 %v968, %v967
      %v972 = vpack.c.b16 %v970, %v969
      %vm975 = vcmask 261120
      %v977 = vsel %vm975, %v952, 0
      %979 = vmatpush.bf16.msra.mxu0 0
      %980 = vmatpush.bf16.msra.mxu0 0
      %981 = vmatpush.bf16.msra.mxu0 0
      %982 = vmatpush.bf16.msra.mxu0 0
      %983 = vmatpush.bf16.msra.mxu0 0
      %984 = vmatpush.bf16.msra.mxu0 0
      %985 = vmatpush.bf16.msra.mxu0 %v972
      %986 = vmatpush.bf16.msra.mxu0 %v971
      %987 = vmatmul.bf16.gmra.mxu0 %v977
      %v988 = vpop.f32.mrf.mxu0
      %v989 = vadd.f32 %v961, %v988
      %v990 = vpop.f32.mrf.mxu0
      %991 = vdwg.mxu0
      %v992 = vld [vmem:[%s887] sm:$0xf]
      %v993 = vld [vmem:[%s887 + $0x4] sm:$0xf]
      %v994 = vld [vmem:[%s887 + $0x8] sm:$0xf]
      %v995 = vld [vmem:[%s887 + $0xc] sm:$0xf]
      %v996 = vld [vmem:[%s890] sm:$0x1]
      %v998 = vperm.slane %v996, 0
      %v1004 = vunpack.c.l.b16 %v992
      %v1005 = vunpack.c.l.b16 %v993
      %v1006 = vunpack.c.l.b16 %v994
      %v1007 = vunpack.c.l.b16 %v995
      %v1008 = vpack.c.b16 %v1005, %v1004
      %v1009 = vpack.c.b16 %v1007, %v1006
      %1012 = vmatpush.bf16.msra.mxu0 0
      %1013 = vmatpush.bf16.msra.mxu0 0
      %1014 = vmatpush.bf16.msra.mxu0 0
      %1015 = vmatpush.bf16.msra.mxu0 0
      %1016 = vmatpush.bf16.msra.mxu0 0
      %1017 = vmatpush.bf16.msra.mxu0 0
      %1018 = vmatpush.bf16.msra.mxu0 %v1009
      %1019 = vmatpush.bf16.msra.mxu0 %v1008
      %1020 = vmatmul.bf16.gmra.mxu0 %v977
      %v1021 = vpop.f32.mrf.mxu0
      %v1022 = vadd.f32 %v998, %v1021
      %v1023 = vpop.f32.mrf.mxu0
      %1024 = vdwg.mxu0
      %v1025 = vld [vmem:[%s895] sm:$0xf]
      %v1026 = vld [vmem:[%s895 + $0x4] sm:$0xf]
      %v1027 = vld [vmem:[%s895 + $0x8] sm:$0xf]
      %v1028 = vld [vmem:[%s895 + $0xc] sm:$0xf]
      %v1029 = vld [vmem:[%s898] sm:$0x1]
      %v1031 = vperm.slane %v1029, 0
      %v1037 = vunpack.c.l.b16 %v1025
      %v1038 = vunpack.c.l.b16 %v1026
      %v1039 = vunpack.c.l.b16 %v1027
      %v1040 = vunpack.c.l.b16 %v1028
      %v1041 = vpack.c.b16 %v1038, %v1037
      %v1042 = vpack.c.b16 %v1040, %v1039
      %1045 = vmatpush.bf16.msra.mxu0 0
      %1046 = vmatpush.bf16.msra.mxu0 0
      %1047 = vmatpush.bf16.msra.mxu0 0
      %1048 = vmatpush.bf16.msra.mxu0 0
      %1049 = vmatpush.bf16.msra.mxu0 0
      %1050 = vmatpush.bf16.msra.mxu0 0
      %1051 = vmatpush.bf16.msra.mxu0 %v1042
      %1052 = vmatpush.bf16.msra.mxu0 %v1041
      %1053 = vmatmul.bf16.gmra.mxu0 %v977
      %v1054 = vpop.f32.mrf.mxu0
      %v1055 = vadd.f32 %v1031, %v1054
      %v1056 = vpop.f32.mrf.mxu0
      %1057 = vdwg.mxu0
      %1059 = vrot.lane.b32.xlu0 %v989, 120
      %v1060 = vpop.permute.xlu0 %1059
      %1062 = vrot.lane.b32.xlu0 %v989, 112
      %v1063 = vpop.permute.xlu0 %1062
      %1065 = vrot.lane.b32.xlu0 %v989, 104
      %v1066 = vpop.permute.xlu0 %1065
      %v1068 = vrot.slane %v1063, 4
      %vm1069 = vcmask 1047556
      %v1070 = vsel %vm1069, %v1068, %v989
      %v1071 = vrot.slane %v989, 4
      %v1072 = vsel %vm1069, %v1063, %v1071
      %v1074 = vunpack.c.l.s4 1983009808
      %v1075 = vunpack.c.0.s8 %v1074
      %v1076 = vperm.slane %v1070, %v1075
      %v1078 = vunpack.c.l.s4 1983009808
      %v1079 = vunpack.c.0.s8 %v1078
      %v1080 = vperm.slane %v1072, %v1079
      %v1081 = vrot.slane %v1066, 4
      %v1082 = vsel %vm1069, %v1081, %v1060
      %v1083 = vrot.slane %v1060, 4
      %v1084 = vsel %vm1069, %v1066, %v1083
      %v1086 = vunpack.c.l.s4 1983009808
      %v1087 = vunpack.c.0.s8 %v1086
      %v1088 = vperm.slane %v1082, %v1087
      %v1090 = vunpack.c.l.s4 1983009808
      %v1091 = vunpack.c.0.s8 %v1090
      %v1092 = vperm.slane %v1084, %v1091
      %v1093 = vrot.slane %v1088, 4
      %v1094 = vsel %vm1069, %v1093, %v1076
      %v1095 = vrot.slane %v1076, 4
      %v1096 = vsel %vm1069, %v1088, %v1095
      %v1098 = vunpack.c.l.s4 1934713408
      %v1099 = vunpack.c.0.s8 %v1098
      %v1100 = vperm.slane %v1094, %v1099
      %v1102 = vunpack.c.l.s4 1934713408
      %v1103 = vunpack.c.0.s8 %v1102
      %v1104 = vperm.slane %v1096, %v1103
      %v1105 = vrot.slane %v1092, 4
      %v1106 = vsel %vm1069, %v1105, %v1080
      %v1107 = vrot.slane %v1080, 4
      %v1108 = vsel %vm1069, %v1092, %v1107
      %v1110 = vunpack.c.l.s4 1934713408
      %v1111 = vunpack.c.0.s8 %v1110
      %v1112 = vperm.slane %v1106, %v1111
      %v1114 = vunpack.c.l.s4 1934713408
      %v1115 = vunpack.c.0.s8 %v1114
      %v1116 = vperm.slane %v1108, %v1115
      %v1117 = vrot.slane %v1100, 4
      %v1118 = vsel %vm1069, 0.0, %v1117
      %v1119 = vrot.slane %v1104, 4
      %v1120 = vsel %vm1069, 0.0, %v1119
      %v1121 = vrot.slane %v1112, 4
      %v1122 = vsel %vm1069, 0.0, %v1121
      %v1123 = vrot.slane %v1116, 4
      %v1124 = vsel %vm1069, 0.0, %v1123
      %v1125 = vsel %vm1069, %v1119, %v1100
      %v1127 = vunpack.c.l.s4 1983009808
      %v1128 = vunpack.c.0.s8 %v1127
      %v1129 = vperm.slane %v1125, %v1128
      %v1130 = vrot.slane %v1120, 4
      %v1131 = vsel %vm1069, %v1130, %v1118
      %v1133 = vunpack.c.l.s4 1983009808
      %v1134 = vunpack.c.0.s8 %v1133
      %v1135 = vperm.slane %v1131, %v1134
      %v1136 = vsel %vm1069, %v1123, %v1112
      %v1138 = vunpack.c.l.s4 1983009808
      %v1139 = vunpack.c.0.s8 %v1138
      %v1140 = vperm.slane %v1136, %v1139
      %v1141 = vrot.slane %v1124, 4
      %v1142 = vsel %vm1069, %v1141, %v1122
      %v1144 = vunpack.c.l.s4 1983009808
      %v1145 = vunpack.c.0.s8 %v1144
      %v1146 = vperm.slane %v1142, %v1145
      %v1147 = vrot.slane %v1135, 4
      %v1148 = vsel %vm1069, %v1147, %v1129
      %v1149 = vrot.slane %v1129, 4
      %v1150 = vsel %vm1069, %v1135, %v1149
      %v1152 = vunpack.c.l.s4 1934713408
      %v1153 = vunpack.c.0.s8 %v1152
      %v1154 = vperm.slane %v1148, %v1153
      %v1156 = vunpack.c.l.s4 1934713408
      %v1157 = vunpack.c.0.s8 %v1156
      %v1158 = vperm.slane %v1150, %v1157
      %v1159 = vrot.slane %v1146, 4
      %v1160 = vsel %vm1069, %v1159, %v1140
      %v1161 = vrot.slane %v1140, 4
      %v1162 = vsel %vm1069, %v1146, %v1161
      %v1164 = vunpack.c.l.s4 1934713408
      %v1165 = vunpack.c.0.s8 %v1164
      %v1166 = vperm.slane %v1160, %v1165
      %v1168 = vunpack.c.l.s4 1934713408
      %v1169 = vunpack.c.0.s8 %v1168
      %v1170 = vperm.slane %v1162, %v1169
      %v1171 = vrot.slane %v1166, 4
      %v1172 = vsel %vm1069, %v1171, %v1154
      %v1173 = vrot.slane %v1154, 4
      %v1174 = vsel %vm1069, %v1166, %v1173
      %v1175 = vrot.slane %v1170, 4
      %v1176 = vsel %vm1069, %v1175, %v1158
      %v1177 = vrot.slane %v1158, 4
      %v1178 = vsel %vm1069, %v1170, %v1177
      %v1179 = vpack.c.bf16 %v1172, %v1172
      %v1180 = vpack.c.bf16 %v1174, %v1174
      %v1181 = vpack.c.bf16 %v1176, %v1176
      %v1182 = vpack.c.bf16 %v1178, %v1178
      %1184 = vrot.lane.b32.xlu0 %v1022, 120
      %v1185 = vpop.permute.xlu0 %1184
      %1187 = vrot.lane.b32.xlu0 %v1022, 112
      %v1188 = vpop.permute.xlu0 %1187
      %1190 = vrot.lane.b32.xlu0 %v1022, 104
      %v1191 = vpop.permute.xlu0 %1190
      %v1193 = vrot.slane %v1188, 4
      %v1194 = vsel %vm1069, %v1193, %v1022
      %v1195 = vrot.slane %v1022, 4
      %v1196 = vsel %vm1069, %v1188, %v1195
      %v1198 = vunpack.c.l.s4 1983009808
      %v1199 = vunpack.c.0.s8 %v1198
      %v1200 = vperm.slane %v1194, %v1199
      %v1202 = vunpack.c.l.s4 1983009808
      %v1203 = vunpack.c.0.s8 %v1202
      %v1204 = vperm.slane %v1196, %v1203
      %v1205 = vrot.slane %v1191, 4
      %v1206 = vsel %vm1069, %v1205, %v1185
      %v1207 = vrot.slane %v1185, 4
      %v1208 = vsel %vm1069, %v1191, %v1207
      %v1210 = vunpack.c.l.s4 1983009808
      %v1211 = vunpack.c.0.s8 %v1210
      %v1212 = vperm.slane %v1206, %v1211
      %v1214 = vunpack.c.l.s4 1983009808
      %v1215 = vunpack.c.0.s8 %v1214
      %v1216 = vperm.slane %v1208, %v1215
      %v1217 = vrot.slane %v1212, 4
      %v1218 = vsel %vm1069, %v1217, %v1200
      %v1219 = vrot.slane %v1200, 4
      %v1220 = vsel %vm1069, %v1212, %v1219
      %v1222 = vunpack.c.l.s4 1934713408
      %v1223 = vunpack.c.0.s8 %v1222
      %v1224 = vperm.slane %v1218, %v1223
      %v1226 = vunpack.c.l.s4 1934713408
      %v1227 = vunpack.c.0.s8 %v1226
      %v1228 = vperm.slane %v1220, %v1227
      %v1229 = vrot.slane %v1216, 4
      %v1230 = vsel %vm1069, %v1229, %v1204
      %v1231 = vrot.slane %v1204, 4
      %v1232 = vsel %vm1069, %v1216, %v1231
      %v1234 = vunpack.c.l.s4 1934713408
      %v1235 = vunpack.c.0.s8 %v1234
      %v1236 = vperm.slane %v1230, %v1235
      %v1238 = vunpack.c.l.s4 1934713408
      %v1239 = vunpack.c.0.s8 %v1238
      %v1240 = vperm.slane %v1232, %v1239
      %v1241 = vrot.slane %v1224, 4
      %v1242 = vsel %vm1069, 0.0, %v1241
      %v1243 = vrot.slane %v1228, 4
      %v1244 = vsel %vm1069, 0.0, %v1243
      %v1245 = vrot.slane %v1236, 4
      %v1246 = vsel %vm1069, 0.0, %v1245
      %v1247 = vrot.slane %v1240, 4
      %v1248 = vsel %vm1069, 0.0, %v1247
      %v1249 = vsel %vm1069, %v1243, %v1224
      %v1251 = vunpack.c.l.s4 1983009808
      %v1252 = vunpack.c.0.s8 %v1251
      %v1253 = vperm.slane %v1249, %v1252
      %v1254 = vrot.slane %v1244, 4
      %v1255 = vsel %vm1069, %v1254, %v1242
      %v1257 = vunpack.c.l.s4 1983009808
      %v1258 = vunpack.c.0.s8 %v1257
      %v1259 = vperm.slane %v1255, %v1258
      %v1260 = vsel %vm1069, %v1247, %v1236
      %v1262 = vunpack.c.l.s4 1983009808
      %v1263 = vunpack.c.0.s8 %v1262
      %v1264 = vperm.slane %v1260, %v1263
      %v1265 = vrot.slane %v1248, 4
      %v1266 = vsel %vm1069, %v1265, %v1246
      %v1268 = vunpack.c.l.s4 1983009808
      %v1269 = vunpack.c.0.s8 %v1268
      %v1270 = vperm.slane %v1266, %v1269
      %v1271 = vrot.slane %v1259, 4
      %v1272 = vsel %vm1069, %v1271, %v1253
      %v1273 = vrot.slane %v1253, 4
      %v1274 = vsel %vm1069, %v1259, %v1273
      %v1276 = vunpack.c.l.s4 1934713408
      %v1277 = vunpack.c.0.s8 %v1276
      %v1278 = vperm.slane %v1272, %v1277
      %v1280 = vunpack.c.l.s4 1934713408
      %v1281 = vunpack.c.0.s8 %v1280
      %v1282 = vperm.slane %v1274, %v1281
      %v1283 = vrot.slane %v1270, 4
      %v1284 = vsel %vm1069, %v1283, %v1264
      %v1285 = vrot.slane %v1264, 4
      %v1286 = vsel %vm1069, %v1270, %v1285
      %v1288 = vunpack.c.l.s4 1934713408
      %v1289 = vunpack.c.0.s8 %v1288
      %v1290 = vperm.slane %v1284, %v1289
      %v1292 = vunpack.c.l.s4 1934713408
      %v1293 = vunpack.c.0.s8 %v1292
      %v1294 = vperm.slane %v1286, %v1293
      %v1295 = vrot.slane %v1290, 4
      %v1296 = vsel %vm1069, %v1295, %v1278
      %v1297 = vrot.slane %v1278, 4
      %v1298 = vsel %vm1069, %v1290, %v1297
      %v1299 = vrot.slane %v1294, 4
      %v1300 = vsel %vm1069, %v1299, %v1282
      %v1301 = vrot.slane %v1282, 4
      %v1302 = vsel %vm1069, %v1294, %v1301
      %v1303 = vpack.c.bf16 %v1296, %v1296
      %v1304 = vpack.c.bf16 %v1298, %v1298
      %v1305 = vpack.c.bf16 %v1300, %v1300
      %v1306 = vpack.c.bf16 %v1302, %v1302
      %1308 = vrot.lane.b32.xlu0 %v1055, 120
      %v1309 = vpop.permute.xlu0 %1308
      %1311 = vrot.lane.b32.xlu0 %v1055, 112
      %v1312 = vpop.permute.xlu0 %1311
      %1314 = vrot.lane.b32.xlu0 %v1055, 104
      %v1315 = vpop.permute.xlu0 %1314
      %v1317 = vrot.slane %v1312, 4
      %v1318 = vsel %vm1069, %v1317, %v1055
      %v1319 = vrot.slane %v1055, 4
      %v1320 = vsel %vm1069, %v1312, %v1319
      %v1322 = vunpack.c.l.s4 1983009808
      %v1323 = vunpack.c.0.s8 %v1322
      %v1324 = vperm.slane %v1318, %v1323
      %v1326 = vunpack.c.l.s4 1983009808
      %v1327 = vunpack.c.0.s8 %v1326
      %v1328 = vperm.slane %v1320, %v1327
      %v1329 = vrot.slane %v1315, 4
      %v1330 = vsel %vm1069, %v1329, %v1309
      %v1331 = vrot.slane %v1309, 4
      %v1332 = vsel %vm1069, %v1315, %v1331
      %v1334 = vunpack.c.l.s4 1983009808
      %v1335 = vunpack.c.0.s8 %v1334
      %v1336 = vperm.slane %v1330, %v1335
      %v1338 = vunpack.c.l.s4 1983009808
      %v1339 = vunpack.c.0.s8 %v1338
      %v1340 = vperm.slane %v1332, %v1339
      %v1341 = vrot.slane %v1336, 4
      %v1342 = vsel %vm1069, %v1341, %v1324
      %v1343 = vrot.slane %v1324, 4
      %v1344 = vsel %vm1069, %v1336, %v1343
      %v1346 = vunpack.c.l.s4 1934713408
      %v1347 = vunpack.c.0.s8 %v1346
      %v1348 = vperm.slane %v1342, %v1347
      %v1350 = vunpack.c.l.s4 1934713408
      %v1351 = vunpack.c.0.s8 %v1350
      %v1352 = vperm.slane %v1344, %v1351
      %v1353 = vrot.slane %v1340, 4
      %v1354 = vsel %vm1069, %v1353, %v1328
      %v1355 = vrot.slane %v1328, 4
      %v1356 = vsel %vm1069, %v1340, %v1355
      %v1358 = vunpack.c.l.s4 1934713408
      %v1359 = vunpack.c.0.s8 %v1358
      %v1360 = vperm.slane %v1354, %v1359
      %v1362 = vunpack.c.l.s4 1934713408
      %v1363 = vunpack.c.0.s8 %v1362
      %v1364 = vperm.slane %v1356, %v1363
      %v1365 = vrot.slane %v1348, 4
      %v1366 = vsel %vm1069, 0.0, %v1365
      %v1367 = vrot.slane %v1352, 4
      %v1368 = vsel %vm1069, 0.0, %v1367
      %v1369 = vrot.slane %v1360, 4
      %v1370 = vsel %vm1069, 0.0, %v1369
      %v1371 = vrot.slane %v1364, 4
      %v1372 = vsel %vm1069, 0.0, %v1371
      %v1373 = vsel %vm1069, %v1367, %v1348
      %v1375 = vunpack.c.l.s4 1983009808
      %v1376 = vunpack.c.0.s8 %v1375
      %v1377 = vperm.slane %v1373, %v1376
      %v1378 = vrot.slane %v1368, 4
      %v1379 = vsel %vm1069, %v1378, %v1366
      %v1381 = vunpack.c.l.s4 1983009808
      %v1382 = vunpack.c.0.s8 %v1381
      %v1383 = vperm.slane %v1379, %v1382
      %v1384 = vsel %vm1069, %v1371, %v1360
      %v1386 = vunpack.c.l.s4 1983009808
      %v1387 = vunpack.c.0.s8 %v1386
      %v1388 = vperm.slane %v1384, %v1387
      %v1389 = vrot.slane %v1372, 4
      %v1390 = vsel %vm1069, %v1389, %v1370
      %v1392 = vunpack.c.l.s4 1983009808
      %v1393 = vunpack.c.0.s8 %v1392
      %v1394 = vperm.slane %v1390, %v1393
      %v1395 = vrot.slane %v1383, 4
      %v1396 = vsel %vm1069, %v1395, %v1377
      %v1397 = vrot.slane %v1377, 4
      %v1398 = vsel %vm1069, %v1383, %v1397
      %v1400 = vunpack.c.l.s4 1934713408
      %v1401 = vunpack.c.0.s8 %v1400
      %v1402 = vperm.slane %v1396, %v1401
      %v1404 = vunpack.c.l.s4 1934713408
      %v1405 = vunpack.c.0.s8 %v1404
      %v1406 = vperm.slane %v1398, %v1405
      %v1407 = vrot.slane %v1394, 4
      %v1408 = vsel %vm1069, %v1407, %v1388
      %v1409 = vrot.slane %v1388, 4
      %v1410 = vsel %vm1069, %v1394, %v1409
      %v1412 = vunpack.c.l.s4 1934713408
      %v1413 = vunpack.c.0.s8 %v1412
      %v1414 = vperm.slane %v1408, %v1413
      %v1416 = vunpack.c.l.s4 1934713408
      %v1417 = vunpack.c.0.s8 %v1416
      %v1418 = vperm.slane %v1410, %v1417
      %v1419 = vrot.slane %v1414, 4
      %v1420 = vsel %vm1069, %v1419, %v1402
      %v1421 = vrot.slane %v1402, 4
      %v1422 = vsel %vm1069, %v1414, %v1421
      %v1423 = vrot.slane %v1418, 4
      %v1424 = vsel %vm1069, %v1423, %v1406
      %v1425 = vrot.slane %v1406, 4
      %v1426 = vsel %vm1069, %v1418, %v1425
      %v1427 = vpack.c.bf16 %v1420, %v1420
      %v1428 = vpack.c.bf16 %v1422, %v1422
      %v1429 = vpack.c.bf16 %v1424, %v1424
      %v1430 = vpack.c.bf16 %v1426, %v1426
      %vm1431 = vcmask 64512
      %v1433 = vsel %vm1431, %v1179, 0
      %v1436 = vsel %vm1431, %v1303, 0
      %1438 = vmatpush.bf16.xpose.msra.mxu0 0
      %1439 = vmatpush.bf16.xpose.msra.mxu0 0
      %1440 = vmatpush.bf16.xpose.msra.mxu0 0
      %1441 = vmatpush.bf16.xpose.msra.mxu0 0
      %1442 = vmatpush.bf16.xpose.msra.mxu0 0
      %1443 = vmatpush.bf16.xpose.msra.mxu0 0
      %1444 = vmatpush.bf16.xpose.msra.mxu0 0
      %1445 = vmatpush.bf16.xpose.msra.mxu0 %v1436
      %1446 = vmatmul.bf16.gmra.mxu0 %v1433
      %v1447 = vpop.f32.mrf.mxu0
      %v1448 = vadd.f32 0.0, %v1447
      %v1449 = vpop.f32.mrf.mxu0
      %1450 = vdwg.mxu0
      %v1452 = vsel %vm1431, %v1180, 0
      %v1455 = vsel %vm1431, %v1304, 0
      %1457 = vmatpush.bf16.xpose.msra.mxu0 0
      %1458 = vmatpush.bf16.xpose.msra.mxu0 0
      %1459 = vmatpush.bf16.xpose.msra.mxu0 0
      %1460 = vmatpush.bf16.xpose.msra.mxu0 0
      %1461 = vmatpush.bf16.xpose.msra.mxu0 0
      %1462 = vmatpush.bf16.xpose.msra.mxu0 0
      %1463 = vmatpush.bf16.xpose.msra.mxu0 0
      %1464 = vmatpush.bf16.xpose.msra.mxu0 %v1455
      %1465 = vmatmul.bf16.gmra.mxu0 %v1452
      %v1466 = vpop.f32.mrf.mxu0
      %v1467 = vadd.f32 0.0, %v1466
      %v1468 = vpop.f32.mrf.mxu0
      %1469 = vdwg.mxu0
      %v1471 = vsel %vm1431, %v1181, 0
      %v1474 = vsel %vm1431, %v1305, 0
      %1476 = vmatpush.bf16.xpose.msra.mxu0 0
      %1477 = vmatpush.bf16.xpose.msra.mxu0 0
      %1478 = vmatpush.bf16.xpose.msra.mxu0 0
      %1479 = vmatpush.bf16.xpose.msra.mxu0 0
      %1480 = vmatpush.bf16.xpose.msra.mxu0 0
      %1481 = vmatpush.bf16.xpose.msra.mxu0 0
      %1482 = vmatpush.bf16.xpose.msra.mxu0 0
      %1483 = vmatpush.bf16.xpose.msra.mxu0 %v1474
      %1484 = vmatmul.bf16.gmra.mxu0 %v1471
      %v1485 = vpop.f32.mrf.mxu0
      %v1486 = vadd.f32 0.0, %v1485
      %v1487 = vpop.f32.mrf.mxu0
      %1488 = vdwg.mxu0
      %v1490 = vsel %vm1431, %v1182, 0
      %v1493 = vsel %vm1431, %v1306, 0
      %1495 = vmatpush.bf16.xpose.msra.mxu0 0
      %1496 = vmatpush.bf16.xpose.msra.mxu0 0
      %1497 = vmatpush.bf16.xpose.msra.mxu0 0
      %1498 = vmatpush.bf16.xpose.msra.mxu0 0
      %1499 = vmatpush.bf16.xpose.msra.mxu0 0
      %1500 = vmatpush.bf16.xpose.msra.mxu0 0
      %1501 = vmatpush.bf16.xpose.msra.mxu0 0
      %1502 = vmatpush.bf16.xpose.msra.mxu0 %v1493
      %1503 = vmatmul.bf16.gmra.mxu0 %v1490
      %v1504 = vpop.f32.mrf.mxu0
      %v1505 = vadd.f32 0.0, %v1504
      %v1506 = vpop.f32.mrf.mxu0
      %1507 = vdwg.mxu0
      %v1508 = vmul.f32 %v1448, 0.35355338
      %v1509 = vmul.f32 %v1467, 0.35355338
      %v1510 = vmul.f32 %v1486, 0.35355338
      %v1511 = vmul.f32 %v1505, 0.35355338
      %v1513 = vperm.slane %v954, 0
      %v1515 = vsub.f32 %v1508, %v1513
      %v1516 = vsub.f32 %v1509, %v1513
      %v1517 = vsub.f32 %v1510, %v1513
      %v1518 = vsub.f32 %v1511, %v1513
      %v1519 = vsel %vm1431, %v1515, -inf
      %1520 = vmax.xlane.f32.xlu0 %v1519
      %v1521 = vpop.xlane.xlu0 %1520
      %v1522 = vsel %vm1431, %v1516, -inf
      %1523 = vmax.xlane.f32.xlu0 %v1522
      %v1524 = vpop.xlane.xlu0 %1523
      %v1525 = vsel %vm1431, %v1517, -inf
      %1526 = vmax.xlane.f32.xlu0 %v1525
      %v1527 = vpop.xlane.xlu0 %1526
      %v1528 = vsel %vm1431, %v1518, -inf
      %1529 = vmax.xlane.f32.xlu0 %v1528
      %v1530 = vpop.xlane.xlu0 %1529
      %v1531 = vsub.f32 %v1515, %v1521
      %v1532 = vsub.f32 %v1516, %v1524
      %v1533 = vsub.f32 %v1517, %v1527
      %v1534 = vsub.f32 %v1518, %v1530
      %v1535 = vmul.f32 %v1531, 1.442695
      %v1536 = vpow.pop %v1535
      %v1537 = vmul.f32 %v1532, 1.442695
      %v1538 = vpow.pop %v1537
      %v1539 = vmul.f32 %v1533, 1.442695
      %v1540 = vpow.pop %v1539
      %v1541 = vmul.f32 %v1534, 1.442695
      %v1542 = vpow.pop %v1541
      %v1543 = vsel %vm1431, %v1536, 0.0
      %1544 = vadd.xlane.f32.xlu0 %v1543
      %v1545 = vpop.xlane.xlu0 %1544
      %v1546 = vsel %vm1431, %v1538, 0.0
      %1547 = vadd.xlane.f32.xlu0 %v1546
      %v1548 = vpop.xlane.xlu0 %1547
      %v1549 = vsel %vm1431, %v1540, 0.0
      %1550 = vadd.xlane.f32.xlu0 %v1549
      %v1551 = vpop.xlane.xlu0 %1550
      %v1552 = vsel %vm1431, %v1542, 0.0
      %1553 = vadd.xlane.f32.xlu0 %v1552
      %v1554 = vpop.xlane.xlu0 %1553
      %v1555 = vrcp.pop %v1545
      %v1556 = vrcp.pop %v1548
      %v1557 = vrcp.pop %v1551
      %v1558 = vrcp.pop %v1554
      %v1559 = vmul.f32 %v1536, %v1555
      %v1560 = vmul.f32 %v1538, %v1556
      %v1561 = vmul.f32 %v1540, %v1557
      %v1562 = vmul.f32 %v1542, %v1558
      %v1563 = vpack.c.bf16 %v1559, %v1559
      %v1564 = vpack.c.bf16 %v1560, %v1560
      %v1565 = vpack.c.bf16 %v1561, %v1561
      %v1566 = vpack.c.bf16 %v1562, %v1562
      %v1568 = vsel %vm1431, %v1563, 0
      %vm1570 = vcmask 1043456
      %v1572 = vsel %vm1570, %v1427, 0
      %1574 = vmatpush.bf16.msra.mxu0 0
      %1575 = vmatpush.bf16.msra.mxu0 0
      %1576 = vmatpush.bf16.msra.mxu0 0
      %1577 = vmatpush.bf16.msra.mxu0 0
      %1578 = vmatpush.bf16.msra.mxu0 0
      %1579 = vmatpush.bf16.msra.mxu0 0
      %1580 = vmatpush.bf16.msra.mxu0 0
      %1581 = vmatpush.bf16.msra.mxu0 %v1572
      %1582 = vmatmul.bf16.gmra.mxu0 %v1568
      %v1583 = vpop.f32.mrf.mxu0
      %v1584 = vadd.f32 0.0, %v1583
      %v1585 = vpop.f32.mrf.mxu0
      %1586 = vdwg.mxu0
      %v1588 = vsel %vm1431, %v1564, 0
      %v1591 = vsel %vm1570, %v1428, 0
      %1593 = vmatpush.bf16.msra.mxu0 0
      %1594 = vmatpush.bf16.msra.mxu0 0
      %1595 = vmatpush.bf16.msra.mxu0 0
      %1596 = vmatpush.bf16.msra.mxu0 0
      %1597 = vmatpush.bf16.msra.mxu0 0
      %1598 = vmatpush.bf16.msra.mxu0 0
      %1599 = vmatpush.bf16.msra.mxu0 0
      %1600 = vmatpush.bf16.msra.mxu0 %v1591
      %1601 = vmatmul.bf16.gmra.mxu0 %v1588
      %v1602 = vpop.f32.mrf.mxu0
      %v1603 = vadd.f32 0.0, %v1602
      %v1604 = vpop.f32.mrf.mxu0
      %1605 = vdwg.mxu0
      %v1607 = vsel %vm1431, %v1565, 0
      %v1610 = vsel %vm1570, %v1429, 0
      %1612 = vmatpush.bf16.msra.mxu0 0
      %1613 = vmatpush.bf16.msra.mxu0 0
      %1614 = vmatpush.bf16.msra.mxu0 0
      %1615 = vmatpush.bf16.msra.mxu0 0
      %1616 = vmatpush.bf16.msra.mxu0 0
      %1617 = vmatpush.bf16.msra.mxu0 0
      %1618 = vmatpush.bf16.msra.mxu0 0
      %1619 = vmatpush.bf16.msra.mxu0 %v1610
      %1620 = vmatmul.bf16.gmra.mxu0 %v1607
      %v1621 = vpop.f32.mrf.mxu0
      %v1622 = vadd.f32 0.0, %v1621
      %v1623 = vpop.f32.mrf.mxu0
      %1624 = vdwg.mxu0
      %v1626 = vsel %vm1431, %v1566, 0
      %v1629 = vsel %vm1570, %v1430, 0
      %1631 = vmatpush.bf16.msra.mxu0 0
      %1632 = vmatpush.bf16.msra.mxu0 0
      %1633 = vmatpush.bf16.msra.mxu0 0
      %1634 = vmatpush.bf16.msra.mxu0 0
      %1635 = vmatpush.bf16.msra.mxu0 0
      %1636 = vmatpush.bf16.msra.mxu0 0
      %1637 = vmatpush.bf16.msra.mxu0 0
      %1638 = vmatpush.bf16.msra.mxu0 %v1629
      %1639 = vmatmul.bf16.gmra.mxu0 %v1626
      %v1640 = vpop.f32.mrf.mxu0
      %v1641 = vadd.f32 0.0, %v1640
      %v1642 = vpop.f32.mrf.mxu0
      %1643 = vdwg.mxu0
      %v1644 = vrot.slane %v1622, 4
      %v1645 = vsel %vm1069, %v1644, %v1584
      %v1646 = vrot.slane %v1584, 4
      %v1647 = vsel %vm1069, %v1622, %v1646
      %v1649 = vunpack.c.l.s4 1983009808
      %v1650 = vunpack.c.0.s8 %v1649
      %v1651 = vperm.slane %v1645, %v1650
      %v1653 = vunpack.c.l.s4 1983009808
      %v1654 = vunpack.c.0.s8 %v1653
      %v1655 = vperm.slane %v1647, %v1654
      %v1656 = vrot.slane %v1641, 4
      %v1657 = vsel %vm1069, %v1656, %v1603
      %v1658 = vrot.slane %v1603, 4
      %v1659 = vsel %vm1069, %v1641, %v1658
      %v1661 = vunpack.c.l.s4 1983009808
      %v1662 = vunpack.c.0.s8 %v1661
      %v1663 = vperm.slane %v1657, %v1662
      %v1665 = vunpack.c.l.s4 1983009808
      %v1666 = vunpack.c.0.s8 %v1665
      %v1667 = vperm.slane %v1659, %v1666
      %v1668 = vrot.slane %v1663, 4
      %v1669 = vsel %vm1069, %v1668, %v1651
      %v1670 = vrot.slane %v1651, 4
      %v1671 = vsel %vm1069, %v1663, %v1670
      %v1673 = vunpack.c.l.s4 1934713408
      %v1674 = vunpack.c.0.s8 %v1673
      %v1675 = vperm.slane %v1669, %v1674
      %v1677 = vunpack.c.l.s4 1934713408
      %v1678 = vunpack.c.0.s8 %v1677
      %v1679 = vperm.slane %v1671, %v1678
      %v1680 = vrot.slane %v1667, 4
      %v1681 = vsel %vm1069, %v1680, %v1655
      %v1682 = vrot.slane %v1655, 4
      %v1683 = vsel %vm1069, %v1667, %v1682
      %v1685 = vunpack.c.l.s4 1934713408
      %v1686 = vunpack.c.0.s8 %v1685
      %v1687 = vperm.slane %v1681, %v1686
      %v1689 = vunpack.c.l.s4 1934713408
      %v1690 = vunpack.c.0.s8 %v1689
      %v1691 = vperm.slane %v1683, %v1690
      %v1692 = vrot.slane %v1675, 4
      %v1693 = vsel %vm1069, 0.0, %v1692
      %v1694 = vrot.slane %v1679, 4
      %v1695 = vsel %vm1069, 0.0, %v1694
      %v1696 = vrot.slane %v1687, 4
      %v1697 = vsel %vm1069, 0.0, %v1696
      %v1698 = vrot.slane %v1691, 4
      %v1699 = vsel %vm1069, 0.0, %v1698
      %v1700 = vsel %vm1069, %v1694, %v1675
      %v1702 = vunpack.c.l.s4 1983009808
      %v1703 = vunpack.c.0.s8 %v1702
      %v1704 = vperm.slane %v1700, %v1703
      %v1705 = vrot.slane %v1695, 4
      %v1706 = vsel %vm1069, %v1705, %v1693
      %v1708 = vunpack.c.l.s4 1983009808
      %v1709 = vunpack.c.0.s8 %v1708
      %v1710 = vperm.slane %v1706, %v1709
      %v1711 = vsel %vm1069, %v1698, %v1687
      %v1713 = vunpack.c.l.s4 1983009808
      %v1714 = vunpack.c.0.s8 %v1713
      %v1715 = vperm.slane %v1711, %v1714
      %v1716 = vrot.slane %v1699, 4
      %v1717 = vsel %vm1069, %v1716, %v1697
      %v1719 = vunpack.c.l.s4 1983009808
      %v1720 = vunpack.c.0.s8 %v1719
      %v1721 = vperm.slane %v1717, %v1720
      %v1722 = vrot.slane %v1710, 4
      %v1723 = vsel %vm1069, %v1722, %v1704
      %v1724 = vrot.slane %v1704, 4
      %v1725 = vsel %vm1069, %v1710, %v1724
      %v1727 = vunpack.c.l.s4 1934713408
      %v1728 = vunpack.c.0.s8 %v1727
      %v1729 = vperm.slane %v1723, %v1728
      %v1731 = vunpack.c.l.s4 1934713408
      %v1732 = vunpack.c.0.s8 %v1731
      %v1733 = vperm.slane %v1725, %v1732
      %v1734 = vrot.slane %v1721, 4
      %v1735 = vsel %vm1069, %v1734, %v1715
      %v1736 = vrot.slane %v1715, 4
      %v1737 = vsel %vm1069, %v1721, %v1736
      %v1739 = vunpack.c.l.s4 1934713408
      %v1740 = vunpack.c.0.s8 %v1739
      %v1741 = vperm.slane %v1735, %v1740
      %v1743 = vunpack.c.l.s4 1934713408
      %v1744 = vunpack.c.0.s8 %v1743
      %v1745 = vperm.slane %v1737, %v1744
      %v1746 = vrot.slane %v1741, 4
      %v1747 = vsel %vm1069, %v1746, %v1729
      %v1748 = vrot.slane %v1729, 4
      %v1749 = vsel %vm1069, %v1741, %v1748
      %v1750 = vrot.slane %v1745, 4
      %v1751 = vsel %vm1069, %v1750, %v1733
      %v1752 = vrot.slane %v1733, 4
      %v1753 = vsel %vm1069, %v1745, %v1752
      %1755 = vrot.lane.b32.xlu0 %v1749, 8
      %v1756 = vpop.permute.xlu0 %1755
      %1759 = vrot.lane.b32.xlu0 %v1751, 16
      %v1760 = vpop.permute.xlu0 %1759
      %1763 = vrot.lane.b32.xlu0 %v1753, 24
      %v1764 = vpop.permute.xlu0 %1763
      %v1766 = vsel %vm1431, %v1747, %v1756
      %vm1767 = vcmask 130048
      %v1768 = vsel %vm1767, %v1766, %v1760
      %vm1769 = vcmask 195584
      %v1770 = vsel %vm1769, %v1768, %v1764
      %v1771 = vpack.c.bf16 %v1770, %v1770
      %v1772 = vld [vmem:[%s903] sm:$0xf]
      %v1773 = vld [vmem:[%s903 + $0x4] sm:$0xf]
      %v1774 = vld [vmem:[%s903 + $0x8] sm:$0xf]
      %v1775 = vld [vmem:[%s903 + $0xc] sm:$0xf]
      %v1776 = vld [vmem:[%s906] sm:$0x1]
      %v1778 = vperm.slane %v1776, 0
      %v1784 = vunpack.c.l.b16 %v1772
      %v1785 = vunpack.c.l.b16 %v1773
      %v1786 = vunpack.c.l.b16 %v1774
      %v1787 = vunpack.c.l.b16 %v1775
      %v1788 = vpack.c.b16 %v1785, %v1784
      %v1789 = vpack.c.b16 %v1787, %v1786
      %v1793 = vsel %vm975, %v1771, 0
      %1795 = vmatpush.bf16.msra.mxu0 0
      %1796 = vmatpush.bf16.msra.mxu0 0
      %1797 = vmatpush.bf16.msra.mxu0 0
      %1798 = vmatpush.bf16.msra.mxu0 0
      %1799 = vmatpush.bf16.msra.mxu0 0
      %1800 = vmatpush.bf16.msra.mxu0 0
      %1801 = vmatpush.bf16.msra.mxu0 %v1789
      %1802 = vmatpush.bf16.msra.mxu0 %v1788
      %1803 = vmatmul.bf16.gmra.mxu0 %v1793
      %v1804 = vpop.f32.mrf.mxu0
      %v1805 = vadd.f32 %v1778, %v1804
      %v1806 = vpop.f32.mrf.mxu0
      %1807 = vdwg.mxu0
      %v1808 = vadd.f32 %v951, %v1805
      %v1809 = vld [vmem:[%s909] sm:$0x1]
      %v1810 = vld [vmem:[%s912] sm:$0x1]
      %v1811 = vsel %vm975, %v1808, 0.0
      %1812 = vadd.xlane.f32.xlu0 %v1811
      %v1813 = vpop.xlane.xlu0 %1812
      %v1814 = vrcp.pop 32.0
      %v1815 = vmul.f32 32.0, %v1814
      %v1816 = vsub.f32 1.0, %v1815
      %v1817 = vmul.f32 %v1814, %v1816
      %v1818 = vadd.f32 %v1814, %v1817
      %vm1819 = vweird.f32 %v1814
      %v1820 = vsel %vm1819, %v1814, %v1818
      %v1821 = vmul.f32 %v1813, %v1820
      %v1822 = vsub.f32 %v1808, %v1821
      %v1823 = vmul.f32 %v1822, %v1822
      %v1824 = vsel %vm975, %v1823, 0.0
      %1825 = vadd.xlane.f32.xlu0 %v1824
      %v1826 = vpop.xlane.xlu0 %1825
      %v1827 = vmul.f32 %v1826, %v1820
      %v1828 = vadd.f32 %v1827, 1e-05
      %v1829 = vrsqrt.pop %v1828
      %v1830 = vmul.f32 %v1829, %v1828
      %v1831 = vmul.f32 %v1830, %v1829
      %v1832 = vmul.f32 0.5, %v1831
      %v1833 = vsub.f32 1.5, %v1832
      %v1834 = vmul.f32 %v1829, %v1833
      %vm1835 = vweird.f32 %v1828
      %vm1836 = vweird.f32 %v1829
      %vm1837 = vmor %vm1835, %vm1836
      %v1838 = vsel %vm1837, %v1829, %v1834
      %v1839 = vmul.f32 %v1822, %v1838
      %v1841 = vperm.slane %v1809, 0
      %v1843 = vmul.f32 %v1839, %v1841
      %v1845 = vperm.slane %v1810, 0
      %v1847 = vadd.f32 %v1843, %v1845
      %v1848 = vpack.c.bf16 %v1847, %v1847
      %v1849 = vld [vmem:[%s917] sm:$0xf]
      %v1850 = vld [vmem:[%s917 + $0x4] sm:$0xf]
      %v1851 = vld [vmem:[%s917 + $0x8] sm:$0xf]
      %v1852 = vld [vmem:[%s917 + $0xc] sm:$0xf]
      %v1853 = vld [vmem:[%s920] sm:$0x1]
      %v1855 = vperm.slane %v1853, 0
      %v1861 = vunpack.c.l.b16 %v1849
      %v1862 = vunpack.c.l.b16 %v1850
      %v1863 = vunpack.c.l.b16 %v1851
      %v1864 = vunpack.c.l.b16 %v1852
      %v1865 = vpack.c.b16 %v1862, %v1861
      %v1866 = vpack.c.b16 %v1864, %v1863
      %v1870 = vsel %vm975, %v1848, 0
      %1872 = vmatpush.bf16.msra.mxu0 0
      %1873 = vmatpush.bf16.msra.mxu0 0
      %1874 = vmatpush.bf16.msra.mxu0 0
      %1875 = vmatpush.bf16.msra.mxu0 0
      %1876 = vmatpush.bf16.msra.mxu0 0
      %1877 = vmatpush.bf16.msra.mxu0 0
      %1878 = vmatpush.bf16.msra.mxu0 %v1866
      %1879 = vmatpush.bf16.msra.mxu0 %v1865
      %1880 = vmatmul.bf16.gmra.mxu0 %v1870
      %v1881 = vpop.f32.mrf.mxu0
      %v1882 = vadd.f32 %v1855, %v1881
      %v1883 = vpop.f32.mrf.mxu0
      %1884 = vdwg.mxu0
      %v1885 = vmax.f32 %v1882, 0.0
      %v1886 = vpack.c.bf16 %v1885, %v1885
      %v1887 = vld [vmem:[%s925] sm:$0xf]
      %v1888 = vld [vmem:[%s925 + $0x4] sm:$0xf]
      %v1889 = vld [vmem:[%s925 + $0x8] sm:$0xf]
      %v1890 = vld [vmem:[%s925 + $0xc] sm:$0xf]
      %v1891 = vld [vmem:[%s925 + $0x10] sm:$0xf]
      %v1892 = vld [vmem:[%s925 + $0x14] sm:$0xf]
      %v1893 = vld [vmem:[%s925 + $0x18] sm:$0xf]
      %v1894 = vld [vmem:[%s925 + $0x1c] sm:$0xf]
      %v1895 = vld [vmem:[%s928] sm:$0x1]
      %v1897 = vperm.slane %v1895, 0
      %v1907 = vunpack.c.l.b16 %v1887
      %v1908 = vunpack.c.l.b16 %v1888
      %v1909 = vunpack.c.l.b16 %v1889
      %v1910 = vunpack.c.l.b16 %v1890
      %v1911 = vunpack.c.l.b16 %v1891
      %v1912 = vunpack.c.l.b16 %v1892
      %v1913 = vunpack.c.l.b16 %v1893
      %v1914 = vunpack.c.l.b16 %v1894
      %v1915 = vpack.c.b16 %v1908, %v1907
      %v1916 = vpack.c.b16 %v1910, %v1909
      %v1917 = vpack.c.b16 %v1912, %v1911
      %v1918 = vpack.c.b16 %v1914, %v1913
      %vm1923 = vcmask 523264
      %v1925 = vsel %vm1923, %v1886, 0
      %1927 = vmatpush.bf16.msra.mxu0 0
      %1928 = vmatpush.bf16.msra.mxu0 0
      %1929 = vmatpush.bf16.msra.mxu0 0
      %1930 = vmatpush.bf16.msra.mxu0 0
      %1931 = vmatpush.bf16.msra.mxu0 %v1918
      %1932 = vmatpush.bf16.msra.mxu0 %v1917
      %1933 = vmatpush.bf16.msra.mxu0 %v1916
      %1934 = vmatpush.bf16.msra.mxu0 %v1915
      %1935 = vmatmul.bf16.gmra.mxu0 %v1925
      %v1936 = vpop.f32.mrf.mxu0
      %v1937 = vadd.f32 %v1897, %v1936
      %v1938 = vpop.f32.mrf.mxu0
      %1939 = vdwg.mxu0
      %v1940 = vadd.f32 %v1847, %v1937
      %v1941 = vld [vmem:[%s931] sm:$0x1]
      %v1942 = vld [vmem:[%s934] sm:$0x1]
      %v1943 = vsel %vm975, %v1940, 0.0
      %1944 = vadd.xlane.f32.xlu0 %v1943
      %v1945 = vpop.xlane.xlu0 %1944
      %v1946 = vmul.f32 %v1945, %v1820
      %v1947 = vsub.f32 %v1940, %v1946
      %v1948 = vmul.f32 %v1947, %v1947
      %v1949 = vsel %vm975, %v1948, 0.0
      %1950 = vadd.xlane.f32.xlu0 %v1949
      %v1951 = vpop.xlane.xlu0 %1950
      %v1952 = vmul.f32 %v1951, %v1820
      %v1953 = vadd.f32 %v1952, 1e-05
      %v1954 = vrsqrt.pop %v1953
      %v1955 = vmul.f32 %v1954, %v1953
      %v1956 = vmul.f32 %v1955, %v1954
      %v1957 = vmul.f32 0.5, %v1956
      %v1958 = vsub.f32 1.5, %v1957
      %v1959 = vmul.f32 %v1954, %v1958
      %vm1960 = vweird.f32 %v1953
      %vm1961 = vweird.f32 %v1954
      %vm1962 = vmor %vm1960, %vm1961
      %v1963 = vsel %vm1962, %v1954, %v1959
      %v1964 = vmul.f32 %v1947, %v1963
      %v1966 = vperm.slane %v1941, 0
      %v1968 = vmul.f32 %v1964, %v1966
      %v1970 = vperm.slane %v1942, 0
      %v1972 = vadd.f32 %v1968, %v1970
      %1973 = vst.msk [vmem:[#allocation2] sm:$0xff] %vm975, %v1972
      %p1974 = scmp.eq.s32.totalorder %s37, 1
      // Predicated region
      $region109: #{dur_encoder_forward.1} parent=103 // pred_check
        %p1975 = pneg %p1974
      $region110: #{dur_encoder_forward.1} parent=103 // pred_check_branch
        %1977 = sbr.rel (%p1975) target = $region112
      $region111: #{dur_encoder_forward.1} parent=103 // pred_region
        %v1978 = vpack.c.bf16 %v1972, %v1972
        %v1979 = vld [vmem:[%s19] sm:$0xff]
        %v1980 = vld [vmem:[%s19 + $0x8] sm:$0xff]
        %v1981 = vld [vmem:[%s19 + $0x10] sm:$0xff]
        %v1982 = vld [vmem:[%s19 + $0x18] sm:$0xff]
        %v1983 = vld [vmem:[%s20] sm:$0x3]
        %v1985 = vperm.slane %v1983, 0
        %v1986 = vperm.slane %v1983, 1
        %v1993 = vunpack.c.l.b16 %v1979
        %v1994 = vunpack.c.h.b16 %v1979
        %v1995 = vunpack.c.l.b16 %v1980
        %v1996 = vunpack.c.h.b16 %v1980
        %v1997 = vunpack.c.l.b16 %v1981
        %v1998 = vunpack.c.h.b16 %v1981
        %v1999 = vunpack.c.l.b16 %v1982
        %v2000 = vunpack.c.h.b16 %v1982
        %v2001 = vpack.c.b16 %v1995, %v1993
        %v2002 = vpack.c.b16 %v1996, %v1994
        %v2003 = vpack.c.b16 %v1999, %v1997
        %v2004 = vpack.c.b16 %v2000, %v1998
        %v2010 = vsel %vm975, %v1978, 0
        %2012 = vmatpush.bf16.msra.mxu0 0
        %2013 = vmatpush.bf16.msra.mxu0 0
        %2014 = vmatpush.bf16.msra.mxu0 0
        %2015 = vmatpush.bf16.msra.mxu0 0
        %2016 = vmatpush.bf16.msra.mxu0 0
        %2017 = vmatpush.bf16.msra.mxu0 0
        %2018 = vmatpush.bf16.msra.mxu0 %v2003
        %2019 = vmatpush.bf16.msra.mxu0 %v2001
        %2020 = vmatmul.bf16.gmra.mxu0 %v2010
        %v2021 = vpop.f32.mrf.mxu0
        %v2022 = vadd.f32 %v1985, %v2021
        %v2023 = vpop.f32.mrf.mxu0
        %2024 = vdwg.mxu0
        %2025 = vmatpush.bf16.msra.mxu0 0
        %2026 = vmatpush.bf16.msra.mxu0 0
        %2027 = vmatpush.bf16.msra.mxu0 0
        %2028 = vmatpush.bf16.msra.mxu0 0
        %2029 = vmatpush.bf16.msra.mxu0 0
        %2030 = vmatpush.bf16.msra.mxu0 0
        %2031 = vmatpush.bf16.msra.mxu0 %v2004
        %2032 = vmatpush.bf16.msra.mxu0 %v2002
        %2033 = vmatmul.bf16.gmra.mxu0 %v2010
        %v2034 = vpop.f32.mrf.mxu0
        %v2035 = vadd.f32 %v1986, %v2034
        %v2036 = vpop.f32.mrf.mxu0
        %2037 = vdwg.mxu0
        %2038 = vst [vmem:[%s939] sm:$0xff] %v2022
        %2039 = vst [vmem:[%s939 + $0x8] sm:$0xff] %v2035
      $region112: #{dur_encoder_forward.1} parent=103 // pred_fallthru
        _
      %p2040 = scmp.lt.s32.totalorder %s36, 1
      %s2041 = scalar_select %p2040, %s36, 1
      %s2042 = smul.addr %s2041, 2
      %s2043 = smul.addr %s2042, 8
      %s2044 = scalar_lea.vmem %s21, %s2043
      // Predicated region
      $region113: #{dur_encoder_forward.1} parent=103 // pred_check
        %p2045 = pneg %p593
      $region114: #{dur_encoder_forward.1} parent=103 // pred_check_branch
        %2047 = sbr.rel (%p2045) target = $region116
      $region115: #{dur_encoder_forward.1} parent=103 // pred_region
        _
      $region116: #{dur_encoder_forward.1} parent=103 // pred_fallthru
        _
    $region104: #{dur_encoder_forward.1} parent=5 // pred_fallthru
      _
    %p2048 = scmp.le.s32.totalorder 2, %s27
    // Predicated region
    $region117: #{dur_encoder_forward.1} parent=5 // pred_check
      %p2049 = pneg %p2048
    $region118: #{dur_encoder_forward.1} parent=5 // pred_check_branch
      %2051 = sbr.rel (%p2049) target = $region120
    $region119: #{dur_encoder_forward.1} parent=5 // pred_region
      %s2052 = ssub.s32 %s27, 2
      // Predicated region
      $region121: #{dur_encoder_forward.1} parent=119 // pred_check
        %p2053 = pneg %p599
      $region122: #{dur_encoder_forward.1} parent=119 // pred_check_branch
        %2055 = sbr.rel (%p2053) target = $region124
      $region123: #{dur_encoder_forward.1} parent=119 // pred_region
        %p2056 = scmp.lt.s32.totalorder %s38, 1
        %s2057 = scalar_select %p2056, %s38, 1
        %s2058 = smul.addr %s2057, 2
        %s2059 = smul.addr %s2058, 8
        %s2060 = scalar_lea.vmem %s21, %s2059
      $region124: #{dur_encoder_forward.1} parent=119 // pred_fallthru
        _
    $region120: #{dur_encoder_forward.1} parent=5 // pred_fallthru
      _
  $region6: #{dur_encoder_forward.1} parent=0 // loop_footer
    %s31 = sadd.s32 1, %s27
  $region7: #{dur_encoder_forward.1} parent=0 // loop_footer_branch
    %26 = sbr.rel target = $region3
  $region8: #{dur_encoder_forward.1} parent=0 // loop_exit
    _

</llo_original>
